<compile_context>
chip_gen: v7x
topology: tpu7x:2x2x1
jax: 0.10.0
libtpu: 0.0.40
codegen_flags: <defaults>
</compile_context>

<pallas_src>
import functools

import numpy as np
import jax
import jax.numpy as jnp
from jax import lax
from jax.experimental import pallas as pl
from jax.experimental.pallas import tpu as pltpu

_LANES = 128


def _round_up(x, m):
    return (x + m - 1) // m * m


# ----------------------------- Pallas kernel ------------------------------ #

def _conv3x3_bn_relu_kernel(x_ref, w_ref, scale_ref, bias_ref, o_ref, pad_ref,
                            *, H, W, H_out, W_out, Cin_p, Cout_p, stride):
    """Fused ZeroPad2d(1) + 3x3 conv (stride s) + folded BN + ReLU.

    x_ref:     (1, H, W, Cin_p)          bf16 unpadded input image
    w_ref:     (3, 3*Cin_p, Cout_p)      bf16; w_ref[kw][kh*Cin_p + ci, co]
    scale_ref: (1, Cout_p)               f32  gamma / sqrt(var + eps)
    bias_ref:  (1, Cout_p)               f32  beta - mean * scale
    o_ref:     (1, H_out, W_out, Cout_p) bf16
    pad_ref:   (Hp, W + 2, Cin_p)        f32  VMEM scratch (zero-padded image)
    """
    # ZeroPad2d(1) into VMEM scratch (no HBM round trip for padding).
    pad_ref[...] = jnp.zeros_like(pad_ref)
    pad_ref[pl.ds(1, H), pl.ds(1, W), :] = x_ref[0].astype(jnp.float32)

    if stride == 1:
        xp = pad_ref[...]                                   # (H+2, W+2, Cin_p)

    acc = jnp.zeros((H_out * W_out, Cout_p), jnp.float32)
    for kw in range(3):
        # Columns kw, kw+stride, ... (output col j uses padded col stride*j+kw).
        if stride == 1:
            x_kw = xp[:, kw:kw + W_out, :]                  # (Hp, W_out, Cin_p)
        else:
            x_kw = pad_ref[:, pl.ds(kw, W_out, stride), :]  # strided sublane read
        # Rows kh, kh+stride, ... for the 3 kh taps; concat the taps along the
        # channel (lane) axis so the MXU sees a single K = 3*Cin_p contraction.
        taps = []
        for kh in range(3):
            if stride == 1:
                t = x_kw[kh:kh + H_out]
            else:
                t = x_kw[kh:kh + stride * H_out]
                t = t.reshape(H_out, stride, W_out, Cin_p)[:, 0]
            taps.append(t)
        patch = jnp.concatenate(taps, axis=-1)              # (H_out, W_out, 3*Cin_p)
        patch = patch.reshape(H_out * W_out, 3 * Cin_p).astype(jnp.bfloat16)
        acc = acc + jnp.dot(patch, w_ref[kw],
                            preferred_element_type=jnp.float32)

    y = acc * scale_ref[0] + bias_ref[0]                    # folded BN (f32)
    y = jnp.maximum(y, 0.0)                                 # ReLU
    o_ref[0] = y.reshape(H_out, W_out, Cout_p).astype(o_ref.dtype)


def conv3x3_bn_relu_pallas(x, w_kw, scale, bias, stride):
    """x: (B, H, W, Cin_p) bf16 -> (B, H_out, W_out, Cout_p) bf16."""
    B, H, W, Cin_p = x.shape
    Cout_p = w_kw.shape[-1]
    H_out = (H - 1) // stride + 1
    W_out = (W - 1) // stride + 1
    Hp = max(H + 2, stride * H_out + 2)   # rows the kernel may touch (zero-filled)

    kernel = functools.partial(
        _conv3x3_bn_relu_kernel, H=H, W=W, H_out=H_out, W_out=W_out,
        Cin_p=Cin_p, Cout_p=Cout_p, stride=stride)

    return pl.pallas_call(
        kernel,
        out_shape=jax.ShapeDtypeStruct((B, H_out, W_out, Cout_p), jnp.bfloat16),
        grid_spec=pltpu.PrefetchScalarGridSpec(
            num_scalar_prefetch=0,
            grid=(B,),
            in_specs=[
                pl.BlockSpec((1, H, W, Cin_p), lambda b: (b, 0, 0, 0)),
                pl.BlockSpec((3, 3 * Cin_p, Cout_p), lambda b: (0, 0, 0)),
                pl.BlockSpec((1, Cout_p), lambda b: (0, 0)),
                pl.BlockSpec((1, Cout_p), lambda b: (0, 0)),
            ],
            out_specs=pl.BlockSpec((1, H_out, W_out, Cout_p),
                                   lambda b: (b, 0, 0, 0)),
            scratch_shapes=[pltpu.VMEM((Hp, W + 2, Cin_p), jnp.float32)],
        ),
        compiler_params=pltpu.CompilerParams(
            dimension_semantics=("parallel",),
            vmem_limit_bytes=48 * 1024 * 1024),
    )(x, w_kw, scale, bias)


# ----------------------- parameter init & forward ------------------------- #

def init_params(key, model_cfg, input_channels):
    """Per-layer params: padded bf16 tap-grouped weights + f32 folded BN."""
    layer_nums = model_cfg['LAYER_NUMS']
    layer_strides = model_cfg['LAYER_STRIDES']
    num_filters = model_cfg['NUM_FILTERS']
    c_in_list = [input_channels, *num_filters[:-1]]
    eps = 0.001

    blocks = []
    for idx in range(len(layer_nums)):
        layers = []
        convs = [(c_in_list[idx], num_filters[idx], layer_strides[idx])]
        convs += [(num_filters[idx], num_filters[idx], 1)] * layer_nums[idx]
        for (cin, cout, stride) in convs:
            key, k_w, k_g, k_b, k_m, k_v = jax.random.split(key, 6)
            # PyTorch Conv2d weight is (Cout, Cin, 3, 3); convert to HWIO.
            w_oihw = jax.random.normal(k_w, (cout, cin, 3, 3), jnp.float32) * 0.1
            w_hwio = jnp.transpose(w_oihw, (2, 3, 1, 0))
            gamma = 1.0 + 0.1 * jax.random.normal(k_g, (cout,), jnp.float32)
            beta = 0.1 * jax.random.normal(k_b, (cout,), jnp.float32)
            mean = 0.1 * jax.random.normal(k_m, (cout,), jnp.float32)
            var = jnp.abs(jax.random.normal(k_v, (cout,), jnp.float32)) + 0.5
            scale = gamma / jnp.sqrt(var + eps)
            bias = beta - mean * scale

            cin_p, cout_p = _round_up(cin, _LANES), _round_up(cout, _LANES)
            w_p = jnp.zeros((3, 3, cin_p, cout_p), jnp.float32)
            w_p = w_p.at[:, :, :cin, :cout].set(w_hwio)
            # Per-kw tap group: concat the 3 kh taps along Cin -> K = 3*Cin_p.
            w_kw = jnp.stack(
                [jnp.concatenate([w_p[kh, kwi] for kh in range(3)], axis=0)
                 for kwi in range(3)], axis=0).astype(jnp.bfloat16)
            scale_p = jnp.zeros((1, cout_p), jnp.float32).at[0, :cout].set(scale)
            bias_p = jnp.zeros((1, cout_p), jnp.float32).at[0, :cout].set(bias)

            layers.append(dict(
                w_kw=w_kw, scale=scale_p, bias=bias_p, stride=stride, cout=cout,
                # unpadded f32 params for the plain-JAX reference
                w_hwio=w_hwio, scale_ref=scale, bias_ref=bias))
        blocks.append(layers)
    return blocks


_STRIDED_OK = {}   # stride -> whether the in-kernel strided path compiled


def _apply_layer(x, layer):
    stride = layer['stride']
    if stride == 1 or _STRIDED_OK.get(stride, True):
        try:
            y = conv3x3_bn_relu_pallas(x, layer['w_kw'], layer['scale'],
                                       layer['bias'], stride)
            jax.block_until_ready(y)
            if stride > 1:
                _STRIDED_OK[stride] = True
            return y
        except Exception:
            if stride == 1:
                raise
            _STRIDED_OK[stride] = False
    # Fallback (mathematically identical): dense conv + subsample, in case
    # strided ref reads are unsupported by the local Mosaic toolchain.
    y = conv3x3_bn_relu_pallas(x, layer['w_kw'], layer['scale'],
                               layer['bias'], 1)
    return y[:, ::stride, ::stride, :]


def bev_encoder_forward(data_dict, blocks):
    """Mirrors BaseBEVEncoder.forward; data_dict['spatial_features'] is NCHW."""
    spatial_features = data_dict['spatial_features']          # (B, C, H, W) f32
    base_h = spatial_features.shape[2]
    cin = spatial_features.shape[1]
    cin_p = _round_up(cin, _LANES)
    # One-time layout change: NHWC, channels zero-padded to 128, bf16 in HBM.
    x = jnp.transpose(spatial_features, (0, 2, 3, 1))
    x = jnp.pad(x, ((0, 0), (0, 0), (0, 0), (0, cin_p - cin)))
    x = x.astype(jnp.bfloat16)
    for i, layers in enumerate(blocks):
        for layer in layers:
            x = _apply_layer(x, layer)
        cout = layers[-1]['cout']
        out = jnp.transpose(x[..., :cout], (0, 3, 1, 2)).astype(jnp.float32)
        data_dict['spatial_features_%dx' % i] = out
        data_dict['spatial_features_stride_%dx' % i] = int(base_h // x.shape[1])
        # NOTE: x (channel-padded, bf16) feeds the next block directly.
    return data_dict


# ------------------------------ reference --------------------------------- #

def ref_forward(data_dict_in, blocks):
    """Plain-JAX reference using the same bf16-in / f32-accumulate math."""
    x = jnp.transpose(data_dict_in['spatial_features'], (0, 2, 3, 1))
    x = x.astype(jnp.bfloat16)
    base_h = data_dict_in['spatial_features'].shape[2]
    outs = {}
    for i, layers in enumerate(blocks):
        for layer in layers:
            s = layer['stride']
            y = lax.conv_general_dilated(
                x, layer['w_hwio'].astype(jnp.bfloat16),
                window_strides=(s, s), padding=((1, 1), (1, 1)),
                dimension_numbers=('NHWC', 'HWIO', 'NHWC'),
                preferred_element_type=jnp.float32)
            y = (y * layer['scale_ref'].reshape(1, 1, 1, -1)
                 + layer['bias_ref'].reshape(1, 1, 1, -1))
            x = jnp.maximum(y, 0.0).astype(jnp.bfloat16)
        outs['spatial_features_%dx' % i] = (
            jnp.transpose(x, (0, 3, 1, 2)).astype(jnp.float32))
        outs['spatial_features_stride_%dx' % i] = int(base_h // x.shape[1])
    return outs


# --------------------------------- main ------------------------------------ #

if __name__ == "__main__":
    model_cfg = {
        'LAYER_NUMS': [1, 1],
        'LAYER_STRIDES': [1, 2],
        'NUM_FILTERS': [8, 16],
    }
    input_channels = 4
    B, H, W = 2, 16, 16

    key = jax.random.PRNGKey(0)
    key, kx = jax.random.split(key)
    spatial_features = jax.random.normal(kx, (B, input_channels, H, W),
                                         jnp.float32)

    blocks = init_params(key, model_cfg, input_channels)

    data_dict = {'spatial_features': spatial_features}
    data_dict = bev_encoder_forward(data_dict, blocks)
    for v in data_dict.values():
        if isinstance(v, jax.Array):
            jax.block_until_ready(v)

    # correctness check against a plain-JAX (XLA conv) reference
    ref = ref_forward({'spatial_features': spatial_features}, blocks)
    for i in range(len(blocks)):
        got = np.asarray(data_dict['spatial_features_%dx' % i], dtype=np.float32)
        exp = np.asarray(ref['spatial_features_%dx' % i], dtype=np.float32)
        assert got.shape == exp.shape, (got.shape, exp.shape)
        np.testing.assert_allclose(got, exp, rtol=2e-2, atol=1e-2)
        assert (data_dict['spatial_features_stride_%dx' % i]
                == ref['spatial_features_stride_%dx' % i])

    print("KERNEL_OK")
</pallas_src>

<mosaic_0001>
module attributes {stable_mosaic.version = 11 : i64} {
  func.func @_conv3x3_bn_relu_kernel(%arg0: i32, %arg1: memref<1x16x16x128xbf16, #tpu.memory_space<vmem>>, %arg2: memref<3x384x128xbf16, #tpu.memory_space<vmem>>, %arg3: memref<1x128xf32, #tpu.memory_space<vmem>>, %arg4: memref<1x128xf32, #tpu.memory_space<vmem>>, %arg5: memref<1x16x16x128xbf16, #tpu.memory_space<vmem>>, %arg6: memref<18x18x128xf32, #tpu.memory_space<vmem>>) attributes {dimension_semantics = [#tpu.dimension_semantics<parallel>], iteration_bounds = array<i64: 2>, scalar_prefetch = 0 : i64, scratch_operands = 1 : i64, tpu.core_type = #tpu.core_type<tc>, window_params = [{transform_indices = @transform_0, window_bounds = array<i64: 1, 16, 16, 128>}, {pipeline_mode = #tpu.pipeline_mode<synchronous>, transform_indices = @transform_1, window_bounds = array<i64: 3, 384, 128>}, {pipeline_mode = #tpu.pipeline_mode<synchronous>, transform_indices = @transform_2, window_bounds = array<i64: 1, 128>}, {pipeline_mode = #tpu.pipeline_mode<synchronous>, transform_indices = @transform_3, window_bounds = array<i64: 1, 128>}, {transform_indices = @transform_4, window_bounds = array<i64: 1, 16, 16, 128>}]} {
    %cst = arith.constant 0.000000e+00 : f32
    %0 = vector.broadcast %cst : f32 to vector<18x18x128xf32>
    %c0 = arith.constant 0 : index
    %c0_0 = arith.constant 0 : index
    %c0_1 = arith.constant 0 : index
    %1 = vector.load %arg6[%c0, %c0_0, %c0_1] : memref<18x18x128xf32, #tpu.memory_space<vmem>>, vector<18x18x128xf32>
    tpu.vector_store %arg6[%c0, %c0_0, %c0_1], %0 {strides = array<i32>} : memref<18x18x128xf32, #tpu.memory_space<vmem>>, vector<18x18x128xf32>,
    %c0_2 = arith.constant 0 : index
    %c0_3 = arith.constant 0 : index
    %c0_4 = arith.constant 0 : index
    %c0_5 = arith.constant 0 : index
    %2 = vector.load %arg1[%c0_2, %c0_3, %c0_4, %c0_5] : memref<1x16x16x128xbf16, #tpu.memory_space<vmem>>, vector<1x16x16x128xbf16>
    %3 = vector.shape_cast %2 : vector<1x16x16x128xbf16> to vector<16x16x128xbf16>
    %4 = arith.extf %3 : vector<16x16x128xbf16> to vector<16x16x128xf32>
    %c1 = arith.constant 1 : index
    %c1_6 = arith.constant 1 : index
    %c0_7 = arith.constant 0 : index
    %5 = vector.load %arg6[%c1, %c1_6, %c0_7] : memref<18x18x128xf32, #tpu.memory_space<vmem>>, vector<16x16x128xf32>
    tpu.vector_store %arg6[%c1, %c1_6, %c0_7], %4 {strides = array<i32>} : memref<18x18x128xf32, #tpu.memory_space<vmem>>, vector<16x16x128xf32>,
    %c0_8 = arith.constant 0 : index
    %c0_9 = arith.constant 0 : index
    %c0_10 = arith.constant 0 : index
    %6 = vector.load %arg6[%c0_8, %c0_9, %c0_10] : memref<18x18x128xf32, #tpu.memory_space<vmem>>, vector<18x18x128xf32>
    %cst_11 = arith.constant 0.000000e+00 : f32
    %7 = vector.broadcast %cst_11 : f32 to vector<256x128xf32>
    %8 = vector.extract_strided_slice %6 {offsets = [0, 0, 0], sizes = [18, 16, 128], strides = [1, 1, 1]} : vector<18x18x128xf32> to vector<18x16x128xf32>
    %9 = vector.extract_strided_slice %8 {offsets = [0, 0, 0], sizes = [16, 16, 128], strides = [1, 1, 1]} : vector<18x16x128xf32> to vector<16x16x128xf32>
    %10 = vector.extract_strided_slice %8 {offsets = [1, 0, 0], sizes = [16, 16, 128], strides = [1, 1, 1]} : vector<18x16x128xf32> to vector<16x16x128xf32>
    %11 = vector.extract_strided_slice %8 {offsets = [2, 0, 0], sizes = [16, 16, 128], strides = [1, 1, 1]} : vector<18x16x128xf32> to vector<16x16x128xf32>
    %12 = tpu.concatenate %9, %10, %11 in 2 : vector<16x16x128xf32>, vector<16x16x128xf32>, vector<16x16x128xf32> -> vector<16x16x384xf32>
    %13 = vector.shape_cast %12 : vector<16x16x384xf32> to vector<256x384xf32>
    %14 = arith.truncf %13 : vector<256x384xf32> to vector<256x384xbf16>
    %c0_12 = arith.constant 0 : index
    %c0_13 = arith.constant 0 : index
    %c0_14 = arith.constant 0 : index
    %15 = vector.load %arg2[%c0_12, %c0_13, %c0_14] : memref<3x384x128xbf16, #tpu.memory_space<vmem>>, vector<1x384x128xbf16>
    %16 = vector.shape_cast %15 : vector<1x384x128xbf16> to vector<384x128xbf16>
    %cst_15 = arith.constant dense<0.000000e+00> : vector<256x128xf32>
    %17 = tpu.matmul %14, %16, %cst_15 {dimension_numbers = #tpu.dot_dimension_numbers<[1], [0], [0], [1], [0, 0, 1, 1], [], []>} : vector<256x384xbf16>, vector<384x128xbf16>, vector<256x128xf32> -> vector<256x128xf32>
    %18 = arith.addf %7, %17 : vector<256x128xf32>
    %19 = vector.extract_strided_slice %6 {offsets = [0, 1, 0], sizes = [18, 16, 128], strides = [1, 1, 1]} : vector<18x18x128xf32> to vector<18x16x128xf32>
    %20 = vector.extract_strided_slice %19 {offsets = [0, 0, 0], sizes = [16, 16, 128], strides = [1, 1, 1]} : vector<18x16x128xf32> to vector<16x16x128xf32>
    %21 = vector.extract_strided_slice %19 {offsets = [1, 0, 0], sizes = [16, 16, 128], strides = [1, 1, 1]} : vector<18x16x128xf32> to vector<16x16x128xf32>
    %22 = vector.extract_strided_slice %19 {offsets = [2, 0, 0], sizes = [16, 16, 128], strides = [1, 1, 1]} : vector<18x16x128xf32> to vector<16x16x128xf32>
    %23 = tpu.concatenate %20, %21, %22 in 2 : vector<16x16x128xf32>, vector<16x16x128xf32>, vector<16x16x128xf32> -> vector<16x16x384xf32>
    %24 = vector.shape_cast %23 : vector<16x16x384xf32> to vector<256x384xf32>
    %25 = arith.truncf %24 : vector<256x384xf32> to vector<256x384xbf16>
    %c1_16 = arith.constant 1 : index
    %c0_17 = arith.constant 0 : index
    %c0_18 = arith.constant 0 : index
    %26 = vector.load %arg2[%c1_16, %c0_17, %c0_18] : memref<3x384x128xbf16, #tpu.memory_space<vmem>>, vector<1x384x128xbf16>
    %27 = vector.shape_cast %26 : vector<1x384x128xbf16> to vector<384x128xbf16>
    %cst_19 = arith.constant dense<0.000000e+00> : vector<256x128xf32>
    %28 = tpu.matmul %25, %27, %cst_19 {dimension_numbers = #tpu.dot_dimension_numbers<[1], [0], [0], [1], [0, 0, 1, 1], [], []>} : vector<256x384xbf16>, vector<384x128xbf16>, vector<256x128xf32> -> vector<256x128xf32>
    %29 = arith.addf %18, %28 : vector<256x128xf32>
    %30 = vector.extract_strided_slice %6 {offsets = [0, 2, 0], sizes = [18, 16, 128], strides = [1, 1, 1]} : vector<18x18x128xf32> to vector<18x16x128xf32>
    %31 = vector.extract_strided_slice %30 {offsets = [0, 0, 0], sizes = [16, 16, 128], strides = [1, 1, 1]} : vector<18x16x128xf32> to vector<16x16x128xf32>
    %32 = vector.extract_strided_slice %30 {offsets = [1, 0, 0], sizes = [16, 16, 128], strides = [1, 1, 1]} : vector<18x16x128xf32> to vector<16x16x128xf32>
    %33 = vector.extract_strided_slice %30 {offsets = [2, 0, 0], sizes = [16, 16, 128], strides = [1, 1, 1]} : vector<18x16x128xf32> to vector<16x16x128xf32>
    %34 = tpu.concatenate %31, %32, %33 in 2 : vector<16x16x128xf32>, vector<16x16x128xf32>, vector<16x16x128xf32> -> vector<16x16x384xf32>
    %35 = vector.shape_cast %34 : vector<16x16x384xf32> to vector<256x384xf32>
    %36 = arith.truncf %35 : vector<256x384xf32> to vector<256x384xbf16>
    %c2 = arith.constant 2 : index
    %c0_20 = arith.constant 0 : index
    %c0_21 = arith.constant 0 : index
    %37 = vector.load %arg2[%c2, %c0_20, %c0_21] : memref<3x384x128xbf16, #tpu.memory_space<vmem>>, vector<1x384x128xbf16>
    %38 = vector.shape_cast %37 : vector<1x384x128xbf16> to vector<384x128xbf16>
    %cst_22 = arith.constant dense<0.000000e+00> : vector<256x128xf32>
    %39 = tpu.matmul %36, %38, %cst_22 {dimension_numbers = #tpu.dot_dimension_numbers<[1], [0], [0], [1], [0, 0, 1, 1], [], []>} : vector<256x384xbf16>, vector<384x128xbf16>, vector<256x128xf32> -> vector<256x128xf32>
    %40 = arith.addf %29, %39 : vector<256x128xf32>
    %c0_23 = arith.constant 0 : index
    %c0_24 = arith.constant 0 : index
    %41 = vector.load %arg3[%c0_23, %c0_24] : memref<1x128xf32, #tpu.memory_space<vmem>>, vector<1x128xf32>
    %42 = vector.shape_cast %41 : vector<1x128xf32> to vector<128xf32>
    %43 = vector.shape_cast %42 : vector<128xf32> to vector<1x128xf32>
    %44 = vector.broadcast %43 : vector<1x128xf32> to vector<256x128xf32>
    %45 = arith.mulf %40, %44 : vector<256x128xf32>
    %c0_25 = arith.constant 0 : index
    %c0_26 = arith.constant 0 : index
    %46 = vector.load %arg4[%c0_25, %c0_26] : memref<1x128xf32, #tpu.memory_space<vmem>>, vector<1x128xf32>
    %47 = vector.shape_cast %46 : vector<1x128xf32> to vector<128xf32>
    %48 = vector.shape_cast %47 : vector<128xf32> to vector<1x128xf32>
    %49 = vector.broadcast %48 : vector<1x128xf32> to vector<256x128xf32>
    %50 = arith.addf %45, %49 : vector<256x128xf32>
    %cst_27 = arith.constant 0.000000e+00 : f32
    %51 = vector.broadcast %cst_27 : f32 to vector<256x128xf32>
    %52 = arith.maximumf %50, %51 : vector<256x128xf32>
    %53 = vector.shape_cast %52 : vector<256x128xf32> to vector<16x16x128xf32>
    %54 = arith.truncf %53 : vector<16x16x128xf32> to vector<16x16x128xbf16>
    %c0_28 = arith.constant 0 : index
    %c0_29 = arith.constant 0 : index
    %c0_30 = arith.constant 0 : index
    %c0_31 = arith.constant 0 : index
    %55 = vector.load %arg5[%c0_28, %c0_29, %c0_30, %c0_31] : memref<1x16x16x128xbf16, #tpu.memory_space<vmem>>, vector<1x16x16x128xbf16>
    %56 = vector.shape_cast %55 : vector<1x16x16x128xbf16> to vector<16x16x128xbf16>
    %57 = vector.shape_cast %54 : vector<16x16x128xbf16> to vector<1x16x16x128xbf16>
    tpu.vector_store %arg5[%c0_28, %c0_29, %c0_30, %c0_31], %57 {strides = array<i32>} : memref<1x16x16x128xbf16, #tpu.memory_space<vmem>>, vector<1x16x16x128xbf16>,
    return
  }
  func.func @transform_0(%arg0: i32) -> (i32, i32, i32, i32) {
    %c0_i32 = arith.constant 0 : i32
    %c0_i32_0 = arith.constant 0 : i32
    %c0_i32_1 = arith.constant 0 : i32
    %c0_i32_2 = arith.constant 0 : i32
    return %arg0, %c0_i32, %c0_i32_0, %c0_i32_1 : i32, i32, i32, i32
  }
  func.func @transform_1(%arg0: i32) -> (i32, i32, i32) {
    %c0_i32 = arith.constant 0 : i32
    %c0_i32_0 = arith.constant 0 : i32
    %c0_i32_1 = arith.constant 0 : i32
    %c0_i32_2 = arith.constant 0 : i32
    return %c0_i32, %c0_i32_0, %c0_i32_1 : i32, i32, i32
  }
  func.func @transform_2(%arg0: i32) -> (i32, i32) {
    %c0_i32 = arith.constant 0 : i32
    %c0_i32_0 = arith.constant 0 : i32
    %c0_i32_1 = arith.constant 0 : i32
    return %c0_i32, %c0_i32_0 : i32, i32
  }
  func.func @transform_3(%arg0: i32) -> (i32, i32) {
    %c0_i32 = arith.constant 0 : i32
    %c0_i32_0 = arith.constant 0 : i32
    %c0_i32_1 = arith.constant 0 : i32
    return %c0_i32, %c0_i32_0 : i32, i32
  }
  func.func @transform_4(%arg0: i32) -> (i32, i32, i32, i32) {
    %c0_i32 = arith.constant 0 : i32
    %c0_i32_0 = arith.constant 0 : i32
    %c0_i32_1 = arith.constant 0 : i32
    %c0_i32_2 = arith.constant 0 : i32
    return %arg0, %c0_i32, %c0_i32_0, %c0_i32_1 : i32, i32, i32, i32
  }
}

</mosaic_0001>

<llo_original>
// kernel: tpu_custom_call.1
$region0: #{tpu_custom_call.1}
  #allocation0 [shape = 'u32[]', space=smem, size = 0x4, offset = 0x4, fixed_abs, tag = 'smem constant byte address 0x4 - core index']
  #allocation1 [shape = 'u32[144,128]{1,0:T(1,128)}', space=vmem, size = 0x12000, scoped, tag = 'internal scratch']
  #allocation2 [shape = 'f32[18,18,128]{2,1,0:T(8,128)}', space=vmem, size = 0x36000, scoped, tag = 'scratch operand']
  %s0 = inlined_call_operand.hbm [shape: bf16[2,16,16,128], index: 0, kind: input, shape index: {}]
  %s1 = inlined_call_operand.hbm [shape: bf16[3,384,128], index: 1, kind: input, shape index: {}]
  %s2 = inlined_call_operand.vmem [shape: f32[1,128], index: 2, kind: input, shape index: {}]
  %s3 = inlined_call_operand.vmem [shape: f32[1,128], index: 3, kind: input, shape index: {}]
  %s4 = inlined_call_operand.hbm [shape: bf16[2,16,16,128], index: 4, kind: output, shape index: {}]
  %s5 = sld [smem:[#allocation0]]
  $region57: #{tpu_custom_call.1} parent=0
    _
  %s7 = ssub.s32 1, %s5
  %s8 = scalar_select 0, %s7, %s5
  $region1: #{tpu_custom_call.1} parent=0
    #allocation3 [shape = 'u8[131072]{0}', space=vmem, size = 0x20000, scoped, tag = 'input window, operand 0']
    #allocation4 [shape = 's32[2]{0}', space=sflag, size = 0x8, scoped, tag = 'scoped memory for tpu_custom_call.1']
    #allocation5 [shape = 's32[2]{0}', space=sflag, size = 0x8, scoped, tag = 'scoped memory for tpu_custom_call.1']
    #allocation6 [shape = 'u8[294912]{0}', space=vmem, size = 0x48000, scoped, tag = 'input window, operand 1, single buffered']
    #allocation7 [shape = 's32[1]{0}', space=sflag, size = 0x4, scoped, tag = 'scoped memory for tpu_custom_call.1']
    #allocation8 [shape = 'u8[131072]{0}', space=vmem, size = 0x20000, scoped, tag = 'output window, operand 0']
    %9 = vsyncpa [#allocation4], 0
    %s10 = scalar_lea.sflag [#allocation4], 1
    %11 = vsyncpa %s10, 0
    %12 = vsyncpa [#allocation7], 0
    %13 = vsyncpa [#allocation5], 0
    %s14 = scalar_lea.sflag [#allocation5], 1
    %15 = vsyncpa %s14, 0
    loop: start=0, step=1, limit=4
    $region2: #{tpu_custom_call.1} parent=1 // loop_pre_header
      _
    $region3: #{tpu_custom_call.1} parent=1 // loop_header
      %s17 = sphi 0, %s21
      %p18 = scmp.ge.s32.totalorder %s17, 4
      %s27 = sphi 0, %s29
      %s30 = sphi 0, %s27
      %s31 = sphi 0, %s30
      %s47 = sphi 0, %s31
      %s51 = sphi 0, %s51
      %s53 = sphi 0, %s51
      %s54 = sphi 0, %s53
      %s68 = sphi 0, %s54
      %s72 = sphi 0, %s72
      %s74 = sphi 0, %s72
      %s75 = sphi 0, %s74
      %s89 = sphi 0, %s75
      %s93 = sphi 0, %s93
      %s95 = sphi 0, %s93
      %s96 = sphi 0, %s95
      %s110 = sphi 0, %s96
      %s116 = sphi 0, %s118
      %s119 = sphi 0, %s116
      %s120 = sphi 0, %s119
      %s136 = sphi 0, %s120
    $region4: #{tpu_custom_call.1} parent=1 // loop_header_branch
      %20 = sbr.rel (%p18) target = $region8
    $region5: #{tpu_custom_call.1} parent=1 // loop_body
      %s22 = ssub.s32 %s17, 1
      %s23 = ssub.s32 %s17, 2
      %s24 = sadd.s32 %s17, 1
      %s25 = ssub.s32 %s17, %s24
      %p26 = scmp.eq.s32.totalorder %s25, 0
      %s28 = sadd.s32 %s27, 1
      %s29 = scalar_select %p26, %s27, %s28
      %p32 = pneg %p26
      %p33 = scmp.eq.s32.totalorder %s17, 1
      %p34 = por %p32, %p33
      %p35 = scmp.ne.s32.totalorder %s27, %s30
      %p36 = scmp.eq.s32.totalorder %s17, 0
      %p37 = por %p35, %p36
      %p38 = scmp.ne.s32.totalorder %s27, %s30
      %p39 = scmp.eq.s32.totalorder %s22, 1
      %p40 = por %p38, %p39
      %p41 = scmp.ne.s32.totalorder %s30, %s31
      %p42 = scmp.eq.s32.totalorder %s22, 0
      %p43 = por %p41, %p42
      %p44 = scmp.ne.s32.totalorder %s30, %s31
      %p45 = scmp.eq.s32.totalorder %s23, 1
      %p46 = por %p44, %p45
      %p48 = scmp.ne.s32.totalorder %s31, %s47
      %p49 = scmp.eq.s32.totalorder %s23, 0
      %p50 = por %p48, %p49
      %s52 = sadd.s32 %s51, 1
      %p55 = scmp.eq.s32.totalorder %s17, 1
      %p56 = scmp.ne.s32.totalorder %s51, %s53
      %p57 = scmp.eq.s32.totalorder %s17, 0
      %p58 = por %p56, %p57
      %p59 = scmp.ne.s32.totalorder %s51, %s53
      %p60 = scmp.eq.s32.totalorder %s22, 1
      %p61 = por %p59, %p60
      %p62 = scmp.ne.s32.totalorder %s53, %s54
      %p63 = scmp.eq.s32.totalorder %s22, 0
      %p64 = por %p62, %p63
      %p65 = scmp.ne.s32.totalorder %s53, %s54
      %p66 = scmp.eq.s32.totalorder %s23, 1
      %p67 = por %p65, %p66
      %p69 = scmp.ne.s32.totalorder %s54, %s68
      %p70 = scmp.eq.s32.totalorder %s23, 0
      %p71 = por %p69, %p70
      %s73 = sadd.s32 %s72, 1
      %p76 = scmp.eq.s32.totalorder %s17, 1
      %p77 = scmp.ne.s32.totalorder %s72, %s74
      %p78 = scmp.eq.s32.totalorder %s17, 0
      %p79 = por %p77, %p78
      %p80 = scmp.ne.s32.totalorder %s72, %s74
      %p81 = scmp.eq.s32.totalorder %s22, 1
      %p82 = por %p80, %p81
      %p83 = scmp.ne.s32.totalorder %s74, %s75
      %p84 = scmp.eq.s32.totalorder %s22, 0
      %p85 = por %p83, %p84
      %p86 = scmp.ne.s32.totalorder %s74, %s75
      %p87 = scmp.eq.s32.totalorder %s23, 1
      %p88 = por %p86, %p87
      %p90 = scmp.ne.s32.totalorder %s75, %s89
      %p91 = scmp.eq.s32.totalorder %s23, 0
      %p92 = por %p90, %p91
      %s94 = sadd.s32 %s93, 1
      %p97 = scmp.eq.s32.totalorder %s17, 1
      %p98 = scmp.ne.s32.totalorder %s93, %s95
      %p99 = scmp.eq.s32.totalorder %s17, 0
      %p100 = por %p98, %p99
      %p101 = scmp.ne.s32.totalorder %s93, %s95
      %p102 = scmp.eq.s32.totalorder %s22, 1
      %p103 = por %p101, %p102
      %p104 = scmp.ne.s32.totalorder %s95, %s96
      %p105 = scmp.eq.s32.totalorder %s22, 0
      %p106 = por %p104, %p105
      %p107 = scmp.ne.s32.totalorder %s95, %s96
      %p108 = scmp.eq.s32.totalorder %s23, 1
      %p109 = por %p107, %p108
      %p111 = scmp.ne.s32.totalorder %s96, %s110
      %p112 = scmp.eq.s32.totalorder %s23, 0
      %p113 = por %p111, %p112
      %s114 = ssub.s32 %s17, %s24
      %p115 = scmp.eq.s32.totalorder %s114, 0
      %s117 = sadd.s32 %s116, 1
      %s118 = scalar_select %p115, %s116, %s117
      %p121 = pneg %p115
      %p122 = scmp.eq.s32.totalorder %s17, 1
      %p123 = por %p121, %p122
      %p124 = scmp.ne.s32.totalorder %s116, %s119
      %p125 = scmp.eq.s32.totalorder %s17, 0
      %p126 = por %p124, %p125
      %p127 = scmp.ne.s32.totalorder %s116, %s119
      %p128 = scmp.eq.s32.totalorder %s22, 1
      %p129 = por %p127, %p128
      %p130 = scmp.ne.s32.totalorder %s119, %s120
      %p131 = scmp.eq.s32.totalorder %s22, 0
      %p132 = por %p130, %p131
      %p133 = scmp.ne.s32.totalorder %s119, %s120
      %p134 = scmp.eq.s32.totalorder %s23, 1
      %p135 = por %p133, %p134
      %p137 = scmp.ne.s32.totalorder %s120, %s136
      %p138 = scmp.eq.s32.totalorder %s23, 0
      %p139 = por %p137, %p138
      %p140 = scmp.le.s32.totalorder 1, %s17
      %p141 = scmp.lt.s32.totalorder %s17, 3
      %p142 = pnand %p140, %p141
      %p143 = pneg %p142
      // Predicated region
      $region9: #{tpu_custom_call.1} parent=5 // pred_check
        _
      $region10: #{tpu_custom_call.1} parent=5 // pred_check_branch
        %145 = sbr.rel (%p142) target = $region12
      $region11: #{tpu_custom_call.1} parent=5 // pred_region
        %s146 = ssub.s32 %s17, 1
        // Predicated region
        $region13: #{tpu_custom_call.1} parent=11 // pred_check
          %p147 = pneg %p64
        $region14: #{tpu_custom_call.1} parent=11 // pred_check_branch
          %149 = sbr.rel (%p147) target = $region16
        $region15: #{tpu_custom_call.1} parent=11 // pred_region
          %s151 = ssub.s32 9216, 9216
          %152 = vsyncadd [#allocation7], %s151
          %s153 = sshll.u32 [#allocation6], 4
          %s154 = int_to_ptr.vmem [resolvable:$true] %s153
          %159 = dma.hbm_to_vmem [thread:$0]  %s1, 9216, %s154, [#allocation7], 64, 64, 4
        $region16: #{tpu_custom_call.1} parent=11 // pred_fallthru
          _
        // Predicated region
        $region17: #{tpu_custom_call.1} parent=11 // pred_check
          %p160 = pneg %p85
        $region18: #{tpu_custom_call.1} parent=11 // pred_check_branch
          %162 = sbr.rel (%p160) target = $region20
        $region19: #{tpu_custom_call.1} parent=11 // pred_region
          _
        $region20: #{tpu_custom_call.1} parent=11 // pred_fallthru
          _
        // Predicated region
        $region21: #{tpu_custom_call.1} parent=11 // pred_check
          %p163 = pneg %p106
        $region22: #{tpu_custom_call.1} parent=11 // pred_check_branch
          %165 = sbr.rel (%p163) target = $region24
        $region23: #{tpu_custom_call.1} parent=11 // pred_region
          _
        $region24: #{tpu_custom_call.1} parent=11 // pred_fallthru
          _
      $region12: #{tpu_custom_call.1} parent=5 // pred_fallthru
        _
      %p166 = scmp.lt.s32.totalorder %s17, 2
      // Predicated region
      $region25: #{tpu_custom_call.1} parent=5 // pred_check
        %p167 = pneg %p166
      $region26: #{tpu_custom_call.1} parent=5 // pred_check_branch
        %169 = sbr.rel (%p167) target = $region28
      $region27: #{tpu_custom_call.1} parent=5 // pred_region
        // Predicated region
        $region29: #{tpu_custom_call.1} parent=27 // pred_check
          %p170 = pneg %p37
        $region30: #{tpu_custom_call.1} parent=27 // pred_check_branch
          %172 = sbr.rel (%p170) target = $region32
        $region31: #{tpu_custom_call.1} parent=27 // pred_region
          %s173 = sand.u32 %s27, 1
          %s174 = scalar_lea.sflag [#allocation4], %s173
          %s175 = sand.u32 %s27, 1
          %s176 = smul.addr %s175, 128
          %s177 = scalar_lea.vmem [#allocation3], %s176
          %s179 = ssub.s32 2048, 2048
          %180 = vsyncadd %s174, %s179
          %s181 = smul.addr %s17, 32
          %s182 = smul.addr %s181, 64
          %s183 = scalar_lea.hbm %s0, %s182
          %s184 = sshll.u32 %s177, 4
          %s185 = int_to_ptr.vmem [resolvable:$true] %s184
          %190 = dma.hbm_to_vmem [thread:$0]  %s183, 2048, %s185, %s174, 64, 64, 4
        $region32: #{tpu_custom_call.1} parent=27 // pred_fallthru
          _
      $region28: #{tpu_custom_call.1} parent=5 // pred_fallthru
        _
      %p191 = scmp.le.s32.totalorder 1, %s17
      %p192 = scmp.lt.s32.totalorder %s17, 3
      %p193 = pnand %p191, %p192
      %p194 = pneg %p193
      // Predicated region
      $region33: #{tpu_custom_call.1} parent=5 // pred_check
        _
      $region34: #{tpu_custom_call.1} parent=5 // pred_check_branch
        %196 = sbr.rel (%p193) target = $region36
      $region35: #{tpu_custom_call.1} parent=5 // pred_region
        %s197 = ssub.s32 %s17, 1
        %s198 = sand.u32 %s30, 1
        %s199 = scalar_lea.sflag [#allocation4], %s198
        %s200 = sand.u32 %s30, 1
        %s201 = smul.addr %s200, 128
        %s202 = scalar_lea.vmem [#allocation3], %s201
        // Predicated region
        $region37: #{tpu_custom_call.1} parent=35 // pred_check
          %p203 = pneg %p43
        $region38: #{tpu_custom_call.1} parent=35 // pred_check_branch
          %205 = sbr.rel (%p203) target = $region40
        $region39: #{tpu_custom_call.1} parent=35 // pred_region
          %206 = dma.done %s199, 2048
        $region40: #{tpu_custom_call.1} parent=35 // pred_fallthru
          _
        // Predicated region
        $region41: #{tpu_custom_call.1} parent=35 // pred_check
          %p207 = pneg %p64
        $region42: #{tpu_custom_call.1} parent=35 // pred_check_branch
          %209 = sbr.rel (%p207) target = $region44
        $region43: #{tpu_custom_call.1} parent=35 // pred_region
          %210 = dma.done [#allocation7], 9216
        $region44: #{tpu_custom_call.1} parent=35 // pred_fallthru
          _
        %s211 = sand.u32 %s30, 1
        %s212 = scalar_lea.sflag [#allocation4], %s211
        %s213 = sand.u32 %s30, 1
        %s214 = smul.addr %s213, 128
        %s215 = scalar_lea.vmem [#allocation3], %s214
        %p216 = pneg %p43
        %p217 = pneg %p40
        %p218 = pneg %p64
        %p219 = pneg %p61
        %p220 = pneg %p85
        %p221 = pneg %p82
        %p222 = pneg %p106
        %p223 = pneg %p103
        %p224 = pneg %p132
        %p225 = pneg %p129
        %s226 = sand.u32 %s119, 1
        %s227 = scalar_lea.sflag [#allocation5], %s226
        %s228 = sand.u32 %s119, 1
        %s229 = smul.addr %s228, 128
        %s230 = scalar_lea.vmem [#allocation8], %s229
        %232 = vst [vmem:[#allocation2] sm:$0xff] 0.0
        %233 = vst [vmem:[#allocation2 + $0x8] sm:$0xff] 0.0
        %234 = vst [vmem:[#allocation2 + $0x10] sm:$0x3] 0.0
        %235 = vst [vmem:[#allocation2 + $0x18] sm:$0xff] 0.0
        %236 = vst [vmem:[#allocation2 + $0x20] sm:$0xff] 0.0
        %237 = vst [vmem:[#allocation2 + $0x28] sm:$0x3] 0.0
        %238 = vst [vmem:[#allocation2 + $0x30] sm:$0xff] 0.0
        %239 = vst [vmem:[#allocation2 + $0x38] sm:$0xff] 0.0
        %240 = vst [vmem:[#allocation2 + $0x40] sm:$0x3] 0.0
        %241 = vst [vmem:[#allocation2 + $0x48] sm:$0xff] 0.0
        %242 = vst [vmem:[#allocation2 + $0x50] sm:$0xff] 0.0
        %243 = vst [vmem:[#allocation2 + $0x58] sm:$0x3] 0.0
        %244 = vst [vmem:[#allocation2 + $0x60] sm:$0xff] 0.0
        %245 = vst [vmem:[#allocation2 + $0x68] sm:$0xff] 0.0
        %246 = vst [vmem:[#allocation2 + $0x70] sm:$0x3] 0.0
        %247 = vst [vmem:[#allocation2 + $0x78] sm:$0xff] 0.0
        %248 = vst [vmem:[#allocation2 + $0x80] sm:$0xff] 0.0
        %249 = vst [vmem:[#allocation2 + $0x88] sm:$0x3] 0.0
        %250 = vst [vmem:[#allocation2 + $0x90] sm:$0xff] 0.0
        %251 = vst [vmem:[#allocation2 + $0x98] sm:$0xff] 0.0
        %252 = vst [vmem:[#allocation2 + $0xa0] sm:$0x3] 0.0
        %253 = vst [vmem:[#allocation2 + $0xa8] sm:$0xff] 0.0
        %254 = vst [vmem:[#allocation2 + $0xb0] sm:$0xff] 0.0
        %255 = vst [vmem:[#allocation2 + $0xb8] sm:$0x3] 0.0
        %256 = vst [vmem:[#allocation2 + $0xc0] sm:$0xff] 0.0
        %257 = vst [vmem:[#allocation2 + $0xc8] sm:$0xff] 0.0
        %258 = vst [vmem:[#allocation2 + $0xd0] sm:$0x3] 0.0
        %259 = vst [vmem:[#allocation2 + $0xd8] sm:$0xff] 0.0
        %260 = vst [vmem:[#allocation2 + $0xe0] sm:$0xff] 0.0
        %261 = vst [vmem:[#allocation2 + $0xe8] sm:$0x3] 0.0
        %262 = vst [vmem:[#allocation2 + $0xf0] sm:$0xff] 0.0
        %263 = vst [vmem:[#allocation2 + $0xf8] sm:$0xff] 0.0
        %264 = vst [vmem:[#allocation2 + $0x100] sm:$0x3] 0.0
        %265 = vst [vmem:[#allocation2 + $0x108] sm:$0xff] 0.0
        %266 = vst [vmem:[#allocation2 + $0x110] sm:$0xff] 0.0
        %267 = vst [vmem:[#allocation2 + $0x118] sm:$0x3] 0.0
        %268 = vst [vmem:[#allocation2 + $0x120] sm:$0xff] 0.0
        %269 = vst [vmem:[#allocation2 + $0x128] sm:$0xff] 0.0
        %270 = vst [vmem:[#allocation2 + $0x130] sm:$0x3] 0.0
        %271 = vst [vmem:[#allocation2 + $0x138] sm:$0xff] 0.0
        %272 = vst [vmem:[#allocation2 + $0x140] sm:$0xff] 0.0
        %273 = vst [vmem:[#allocation2 + $0x148] sm:$0x3] 0.0
        %274 = vst [vmem:[#allocation2 + $0x150] sm:$0xff] 0.0
        %275 = vst [vmem:[#allocation2 + $0x158] sm:$0xff] 0.0
        %276 = vst [vmem:[#allocation2 + $0x160] sm:$0x3] 0.0
        %277 = vst [vmem:[#allocation2 + $0x168] sm:$0xff] 0.0
        %278 = vst [vmem:[#allocation2 + $0x170] sm:$0xff] 0.0
        %279 = vst [vmem:[#allocation2 + $0x178] sm:$0x3] 0.0
        %280 = vst [vmem:[#allocation2 + $0x180] sm:$0xff] 0.0
        %281 = vst [vmem:[#allocation2 + $0x188] sm:$0xff] 0.0
        %282 = vst [vmem:[#allocation2 + $0x190] sm:$0x3] 0.0
        %283 = vst [vmem:[#allocation2 + $0x198] sm:$0xff] 0.0
        %284 = vst [vmem:[#allocation2 + $0x1a0] sm:$0xff] 0.0
        %285 = vst [vmem:[#allocation2 + $0x1a8] sm:$0x3] 0.0
        %v286 = vld [vmem:[%s202] sm:$0xf]
        %v287 = vld [vmem:[%s202 + $0x4] sm:$0xf]
        %v288 = vld [vmem:[%s202 + $0x8] sm:$0xf]
        %v289 = vld [vmem:[%s202 + $0xc] sm:$0xf]
        %v290 = vld [vmem:[%s202 + $0x10] sm:$0xf]
        %v291 = vld [vmem:[%s202 + $0x14] sm:$0xf]
        %v292 = vld [vmem:[%s202 + $0x18] sm:$0xf]
        %v293 = vld [vmem:[%s202 + $0x1c] sm:$0xf]
        %v294 = vld [vmem:[%s202 + $0x20] sm:$0xf]
        %v295 = vld [vmem:[%s202 + $0x24] sm:$0xf]
        %v296 = vld [vmem:[%s202 + $0x28] sm:$0xf]
        %v297 = vld [vmem:[%s202 + $0x2c] sm:$0xf]
        %v298 = vld [vmem:[%s202 + $0x30] sm:$0xf]
        %v299 = vld [vmem:[%s202 + $0x34] sm:$0xf]
        %v300 = vld [vmem:[%s202 + $0x38] sm:$0xf]
        %v301 = vld [vmem:[%s202 + $0x3c] sm:$0xf]
        %v302 = vld [vmem:[%s202 + $0x40] sm:$0xf]
        %v303 = vld [vmem:[%s202 + $0x44] sm:$0xf]
        %v304 = vld [vmem:[%s202 + $0x48] sm:$0xf]
        %v305 = vld [vmem:[%s202 + $0x4c] sm:$0xf]
        %v306 = vld [vmem:[%s202 + $0x50] sm:$0xf]
        %v307 = vld [vmem:[%s202 + $0x54] sm:$0xf]
        %v308 = vld [vmem:[%s202 + $0x58] sm:$0xf]
        %v309 = vld [vmem:[%s202 + $0x5c] sm:$0xf]
        %v310 = vld [vmem:[%s202 + $0x60] sm:$0xf]
        %v311 = vld [vmem:[%s202 + $0x64] sm:$0xf]
        %v312 = vld [vmem:[%s202 + $0x68] sm:$0xf]
        %v313 = vld [vmem:[%s202 + $0x6c] sm:$0xf]
        %v314 = vld [vmem:[%s202 + $0x70] sm:$0xf]
        %v315 = vld [vmem:[%s202 + $0x74] sm:$0xf]
        %v316 = vld [vmem:[%s202 + $0x78] sm:$0xf]
        %v317 = vld [vmem:[%s202 + $0x7c] sm:$0xf]
        %v318 = vunpack.c.l.bf16 %v286
        %v319 = vunpack.c.l.bf16 %v287
        %v320 = vunpack.c.l.bf16 %v288
        %v321 = vunpack.c.l.bf16 %v289
        %v322 = vunpack.c.l.bf16 %v290
        %v323 = vunpack.c.l.bf16 %v291
        %v324 = vunpack.c.l.bf16 %v292
        %v325 = vunpack.c.l.bf16 %v293
        %v326 = vunpack.c.l.bf16 %v294
        %v327 = vunpack.c.l.bf16 %v295
        %v328 = vunpack.c.l.bf16 %v296
        %v329 = vunpack.c.l.bf16 %v297
        %v330 = vunpack.c.l.bf16 %v298
        %v331 = vunpack.c.l.bf16 %v299
        %v332 = vunpack.c.l.bf16 %v300
        %v333 = vunpack.c.l.bf16 %v301
        %v334 = vunpack.c.l.bf16 %v302
        %v335 = vunpack.c.l.bf16 %v303
        %v336 = vunpack.c.l.bf16 %v304
        %v337 = vunpack.c.l.bf16 %v305
        %v338 = vunpack.c.l.bf16 %v306
        %v339 = vunpack.c.l.bf16 %v307
        %v340 = vunpack.c.l.bf16 %v308
        %v341 = vunpack.c.l.bf16 %v309
        %v342 = vunpack.c.l.bf16 %v310
        %v343 = vunpack.c.l.bf16 %v311
        %v344 = vunpack.c.l.bf16 %v312
        %v345 = vunpack.c.l.bf16 %v313
        %v346 = vunpack.c.l.bf16 %v314
        %v347 = vunpack.c.l.bf16 %v315
        %v348 = vunpack.c.l.bf16 %v316
        %v349 = vunpack.c.l.bf16 %v317
        %s350 = scalar_lea.vmem [#allocation2], 24
        %351 = vst [vmem:[%s350 + $0x1] sm:$0xff] %v318
        %352 = vst [vmem:[%s350 + $0x9] sm:$0xff] %v319
        %353 = vst [vmem:[%s350 + $0x19] sm:$0xff] %v320
        %354 = vst [vmem:[%s350 + $0x21] sm:$0xff] %v321
        %355 = vst [vmem:[%s350 + $0x31] sm:$0xff] %v322
        %356 = vst [vmem:[%s350 + $0x39] sm:$0xff] %v323
        %357 = vst [vmem:[%s350 + $0x49] sm:$0xff] %v324
        %358 = vst [vmem:[%s350 + $0x51] sm:$0xff] %v325
        %359 = vst [vmem:[%s350 + $0x61] sm:$0xff] %v326
        %360 = vst [vmem:[%s350 + $0x69] sm:$0xff] %v327
        %361 = vst [vmem:[%s350 + $0x79] sm:$0xff] %v328
        %362 = vst [vmem:[%s350 + $0x81] sm:$0xff] %v329
        %363 = vst [vmem:[%s350 + $0x91] sm:$0xff] %v330
        %364 = vst [vmem:[%s350 + $0x99] sm:$0xff] %v331
        %365 = vst [vmem:[%s350 + $0xa9] sm:$0xff] %v332
        %366 = vst [vmem:[%s350 + $0xb1] sm:$0xff] %v333
        %367 = vst [vmem:[%s350 + $0xc1] sm:$0xff] %v334
        %368 = vst [vmem:[%s350 + $0xc9] sm:$0xff] %v335
        %369 = vst [vmem:[%s350 + $0xd9] sm:$0xff] %v336
        %370 = vst [vmem:[%s350 + $0xe1] sm:$0xff] %v337
        %371 = vst [vmem:[%s350 + $0xf1] sm:$0xff] %v338
        %372 = vst [vmem:[%s350 + $0xf9] sm:$0xff] %v339
        %373 = vst [vmem:[%s350 + $0x109] sm:$0xff] %v340
        %374 = vst [vmem:[%s350 + $0x111] sm:$0xff] %v341
        %375 = vst [vmem:[%s350 + $0x121] sm:$0xff] %v342
        %376 = vst [vmem:[%s350 + $0x129] sm:$0xff] %v343
        %377 = vst [vmem:[%s350 + $0x139] sm:$0xff] %v344
        %378 = vst [vmem:[%s350 + $0x141] sm:$0xff] %v345
        %379 = vst [vmem:[%s350 + $0x151] sm:$0xff] %v346
        %380 = vst [vmem:[%s350 + $0x159] sm:$0xff] %v347
        %381 = vst [vmem:[%s350 + $0x169] sm:$0xff] %v348
        %382 = vst [vmem:[%s350 + $0x171] sm:$0xff] %v349
        %v383 = vld [vmem:[#allocation2] sm:$0xff]
        %v384 = vld [vmem:[#allocation2 + $0x8] sm:$0xff]
        %v385 = vld [vmem:[#allocation2 + $0x10] sm:$0x3]
        %v386 = vld [vmem:[#allocation2 + $0x18] sm:$0xff]
        %v387 = vld [vmem:[#allocation2 + $0x20] sm:$0xff]
        %v388 = vld [vmem:[#allocation2 + $0x28] sm:$0x3]
        %v389 = vld [vmem:[#allocation2 + $0x30] sm:$0xff]
        %v390 = vld [vmem:[#allocation2 + $0x38] sm:$0xff]
        %v391 = vld [vmem:[#allocation2 + $0x40] sm:$0x3]
        %v392 = vld [vmem:[#allocation2 + $0x48] sm:$0xff]
        %v393 = vld [vmem:[#allocation2 + $0x50] sm:$0xff]
        %v394 = vld [vmem:[#allocation2 + $0x58] sm:$0x3]
        %v395 = vld [vmem:[#allocation2 + $0x60] sm:$0xff]
        %v396 = vld [vmem:[#allocation2 + $0x68] sm:$0xff]
        %v397 = vld [vmem:[#allocation2 + $0x70] sm:$0x3]
        %v398 = vld [vmem:[#allocation2 + $0x78] sm:$0xff]
        %v399 = vld [vmem:[#allocation2 + $0x80] sm:$0xff]
        %v400 = vld [vmem:[#allocation2 + $0x88] sm:$0x3]
        %v401 = vld [vmem:[#allocation2 + $0x90] sm:$0xff]
        %v402 = vld [vmem:[#allocation2 + $0x98] sm:$0xff]
        %v403 = vld [vmem:[#allocation2 + $0xa0] sm:$0x3]
        %v404 = vld [vmem:[#allocation2 + $0xa8] sm:$0xff]
        %v405 = vld [vmem:[#allocation2 + $0xb0] sm:$0xff]
        %v406 = vld [vmem:[#allocation2 + $0xb8] sm:$0x3]
        %v407 = vld [vmem:[#allocation2 + $0xc0] sm:$0xff]
        %v408 = vld [vmem:[#allocation2 + $0xc8] sm:$0xff]
        %v409 = vld [vmem:[#allocation2 + $0xd0] sm:$0x3]
        %v410 = vld [vmem:[#allocation2 + $0xd8] sm:$0xff]
        %v411 = vld [vmem:[#allocation2 + $0xe0] sm:$0xff]
        %v412 = vld [vmem:[#allocation2 + $0xe8] sm:$0x3]
        %v413 = vld [vmem:[#allocation2 + $0xf0] sm:$0xff]
        %v414 = vld [vmem:[#allocation2 + $0xf8] sm:$0xff]
        %v415 = vld [vmem:[#allocation2 + $0x100] sm:$0x3]
        %v416 = vld [vmem:[#allocation2 + $0x108] sm:$0xff]
        %v417 = vld [vmem:[#allocation2 + $0x110] sm:$0xff]
        %v418 = vld [vmem:[#allocation2 + $0x118] sm:$0x3]
        %v419 = vld [vmem:[#allocation2 + $0x120] sm:$0xff]
        %v420 = vld [vmem:[#allocation2 + $0x128] sm:$0xff]
        %v421 = vld [vmem:[#allocation2 + $0x130] sm:$0x3]
        %v422 = vld [vmem:[#allocation2 + $0x138] sm:$0xff]
        %v423 = vld [vmem:[#allocation2 + $0x140] sm:$0xff]
        %v424 = vld [vmem:[#allocation2 + $0x148] sm:$0x3]
        %v425 = vld [vmem:[#allocation2 + $0x150] sm:$0xff]
        %v426 = vld [vmem:[#allocation2 + $0x158] sm:$0xff]
        %v427 = vld [vmem:[#allocation2 + $0x160] sm:$0x3]
        %v428 = vld [vmem:[#allocation2 + $0x168] sm:$0xff]
        %v429 = vld [vmem:[#allocation2 + $0x170] sm:$0xff]
        %v430 = vld [vmem:[#allocation2 + $0x178] sm:$0x3]
        %v431 = vld [vmem:[#allocation2 + $0x180] sm:$0xff]
        %v432 = vld [vmem:[#allocation2 + $0x188] sm:$0xff]
        %v433 = vld [vmem:[#allocation2 + $0x190] sm:$0x3]
        %v434 = vld [vmem:[#allocation2 + $0x198] sm:$0xff]
        %v435 = vld [vmem:[#allocation2 + $0x1a0] sm:$0xff]
        %v436 = vld [vmem:[#allocation2 + $0x1a8] sm:$0x3]
        %v437 = vpack.c.bf16 %v384, %v383
        %v438 = vpack.c.bf16 %v387, %v386
        %v439 = vpack.c.bf16 %v390, %v389
        %v440 = vpack.c.bf16 %v393, %v392
        %v441 = vpack.c.bf16 %v396, %v395
        %v442 = vpack.c.bf16 %v399, %v398
        %v443 = vpack.c.bf16 %v402, %v401
        %v444 = vpack.c.bf16 %v405, %v404
        %v445 = vpack.c.bf16 %v408, %v407
        %v446 = vpack.c.bf16 %v411, %v410
        %v447 = vpack.c.bf16 %v414, %v413
        %v448 = vpack.c.bf16 %v417, %v416
        %v449 = vpack.c.bf16 %v420, %v419
        %v450 = vpack.c.bf16 %v423, %v422
        %v451 = vpack.c.bf16 %v426, %v425
        %v452 = vpack.c.bf16 %v429, %v428
        %v453 = vpack.c.bf16 %v432, %v431
        %v454 = vpack.c.bf16 %v435, %v434
        %v455 = vld [vmem:[#allocation6] sm:$0xf]
        %v456 = vld [vmem:[#allocation6 + $0x4] sm:$0xf]
        %v457 = vld [vmem:[#allocation6 + $0x8] sm:$0xf]
        %v458 = vld [vmem:[#allocation6 + $0xc] sm:$0xf]
        %v459 = vld [vmem:[#allocation6 + $0x10] sm:$0xf]
        %v460 = vld [vmem:[#allocation6 + $0x14] sm:$0xf]
        %v461 = vld [vmem:[#allocation6 + $0x18] sm:$0xf]
        %v462 = vld [vmem:[#allocation6 + $0x1c] sm:$0xf]
        %v463 = vld [vmem:[#allocation6 + $0x20] sm:$0xf]
        %v464 = vld [vmem:[#allocation6 + $0x24] sm:$0xf]
        %v465 = vld [vmem:[#allocation6 + $0x28] sm:$0xf]
        %v466 = vld [vmem:[#allocation6 + $0x2c] sm:$0xf]
        %v467 = vld [vmem:[#allocation6 + $0x30] sm:$0xf]
        %v468 = vld [vmem:[#allocation6 + $0x34] sm:$0xf]
        %v469 = vld [vmem:[#allocation6 + $0x38] sm:$0xf]
        %v470 = vld [vmem:[#allocation6 + $0x3c] sm:$0xf]
        %v471 = vld [vmem:[#allocation6 + $0x40] sm:$0xf]
        %v472 = vld [vmem:[#allocation6 + $0x44] sm:$0xf]
        %v473 = vld [vmem:[#allocation6 + $0x48] sm:$0xf]
        %v474 = vld [vmem:[#allocation6 + $0x4c] sm:$0xf]
        %v475 = vld [vmem:[#allocation6 + $0x50] sm:$0xf]
        %v476 = vld [vmem:[#allocation6 + $0x54] sm:$0xf]
        %v477 = vld [vmem:[#allocation6 + $0x58] sm:$0xf]
        %v478 = vld [vmem:[#allocation6 + $0x5c] sm:$0xf]
        %v479 = vld [vmem:[#allocation6 + $0x60] sm:$0xf]
        %v480 = vld [vmem:[#allocation6 + $0x64] sm:$0xf]
        %v481 = vld [vmem:[#allocation6 + $0x68] sm:$0xf]
        %v482 = vld [vmem:[#allocation6 + $0x6c] sm:$0xf]
        %v483 = vld [vmem:[#allocation6 + $0x70] sm:$0xf]
        %v484 = vld [vmem:[#allocation6 + $0x74] sm:$0xf]
        %v485 = vld [vmem:[#allocation6 + $0x78] sm:$0xf]
        %v486 = vld [vmem:[#allocation6 + $0x7c] sm:$0xf]
        %v487 = vld [vmem:[#allocation6 + $0x80] sm:$0xf]
        %v488 = vld [vmem:[#allocation6 + $0x84] sm:$0xf]
        %v489 = vld [vmem:[#allocation6 + $0x88] sm:$0xf]
        %v490 = vld [vmem:[#allocation6 + $0x8c] sm:$0xf]
        %v491 = vld [vmem:[#allocation6 + $0x90] sm:$0xf]
        %v492 = vld [vmem:[#allocation6 + $0x94] sm:$0xf]
        %v493 = vld [vmem:[#allocation6 + $0x98] sm:$0xf]
        %v494 = vld [vmem:[#allocation6 + $0x9c] sm:$0xf]
        %v495 = vld [vmem:[#allocation6 + $0xa0] sm:$0xf]
        %v496 = vld [vmem:[#allocation6 + $0xa4] sm:$0xf]
        %v497 = vld [vmem:[#allocation6 + $0xa8] sm:$0xf]
        %v498 = vld [vmem:[#allocation6 + $0xac] sm:$0xf]
        %v499 = vld [vmem:[#allocation6 + $0xb0] sm:$0xf]
        %v500 = vld [vmem:[#allocation6 + $0xb4] sm:$0xf]
        %v501 = vld [vmem:[#allocation6 + $0xb8] sm:$0xf]
        %v502 = vld [vmem:[#allocation6 + $0xbc] sm:$0xf]
        %vm557 = vcmask 1046528
        %v558 = vrot.slane %v383, 1
        %v559 = vrot.slane %v384, 1
        %v560 = vsel %vm557, %v558, %v559
        %v561 = vrot.slane %v386, 1
        %v562 = vrot.slane %v387, 1
        %v563 = vsel %vm557, %v561, %v562
        %v564 = vrot.slane %v389, 1
        %v565 = vrot.slane %v390, 1
        %v566 = vsel %vm557, %v564, %v565
        %v567 = vrot.slane %v385, 1
        %v568 = vsel %vm557, %v559, %v567
        %v569 = vrot.slane %v388, 1
        %v570 = vsel %vm557, %v562, %v569
        %v571 = vrot.slane %v391, 1
        %v572 = vsel %vm557, %v565, %v571
        %v573 = vrot.slane %v392, 1
        %v574 = vrot.slane %v393, 1
        %v575 = vsel %vm557, %v573, %v574
        %v576 = vrot.slane %v394, 1
        %v577 = vsel %vm557, %v574, %v576
        %v578 = vrot.slane %v395, 1
        %v579 = vrot.slane %v396, 1
        %v580 = vsel %vm557, %v578, %v579
        %v581 = vrot.slane %v397, 1
        %v582 = vsel %vm557, %v579, %v581
        %v583 = vrot.slane %v398, 1
        %v584 = vrot.slane %v399, 1
        %v585 = vsel %vm557, %v583, %v584
        %v586 = vrot.slane %v400, 1
        %v587 = vsel %vm557, %v584, %v586
        %v588 = vrot.slane %v401, 1
        %v589 = vrot.slane %v402, 1
        %v590 = vsel %vm557, %v588, %v589
        %v591 = vrot.slane %v403, 1
        %v592 = vsel %vm557, %v589, %v591
        %v593 = vrot.slane %v404, 1
        %v594 = vrot.slane %v405, 1
        %v595 = vsel %vm557, %v593, %v594
        %v596 = vrot.slane %v406, 1
        %v597 = vsel %vm557, %v594, %v596
        %v598 = vrot.slane %v407, 1
        %v599 = vrot.slane %v408, 1
        %v600 = vsel %vm557, %v598, %v599
        %v601 = vrot.slane %v409, 1
        %v602 = vsel %vm557, %v599, %v601
        %v603 = vrot.slane %v410, 1
        %v604 = vrot.slane %v411, 1
        %v605 = vsel %vm557, %v603, %v604
        %v606 = vrot.slane %v412, 1
        %v607 = vsel %vm557, %v604, %v606
        %v608 = vrot.slane %v413, 1
        %v609 = vrot.slane %v414, 1
        %v610 = vsel %vm557, %v608, %v609
        %v611 = vrot.slane %v415, 1
        %v612 = vsel %vm557, %v609, %v611
        %v613 = vrot.slane %v416, 1
        %v614 = vrot.slane %v417, 1
        %v615 = vsel %vm557, %v613, %v614
        %v616 = vrot.slane %v418, 1
        %v617 = vsel %vm557, %v614, %v616
        %v618 = vrot.slane %v419, 1
        %v619 = vrot.slane %v420, 1
        %v620 = vsel %vm557, %v618, %v619
        %v621 = vrot.slane %v421, 1
        %v622 = vsel %vm557, %v619, %v621
        %v623 = vrot.slane %v422, 1
        %v624 = vrot.slane %v423, 1
        %v625 = vsel %vm557, %v623, %v624
        %v626 = vrot.slane %v424, 1
        %v627 = vsel %vm557, %v624, %v626
        %v628 = vrot.slane %v425, 1
        %v629 = vrot.slane %v426, 1
        %v630 = vsel %vm557, %v628, %v629
        %v631 = vrot.slane %v427, 1
        %v632 = vsel %vm557, %v629, %v631
        %v633 = vrot.slane %v428, 1
        %v634 = vrot.slane %v429, 1
        %v635 = vsel %vm557, %v633, %v634
        %v636 = vrot.slane %v430, 1
        %v637 = vsel %vm557, %v634, %v636
        %v638 = vrot.slane %v431, 1
        %v639 = vrot.slane %v432, 1
        %v640 = vsel %vm557, %v638, %v639
        %v641 = vrot.slane %v433, 1
        %v642 = vsel %vm557, %v639, %v641
        %v643 = vrot.slane %v434, 1
        %v644 = vrot.slane %v435, 1
        %v645 = vsel %vm557, %v643, %v644
        %v646 = vrot.slane %v436, 1
        %v647 = vsel %vm557, %v644, %v646
        %v684 = vpack.c.bf16 %v568, %v560
        %v685 = vpack.c.bf16 %v570, %v563
        %v686 = vpack.c.bf16 %v572, %v566
        %v687 = vpack.c.bf16 %v577, %v575
        %v688 = vpack.c.bf16 %v582, %v580
        %v689 = vpack.c.bf16 %v587, %v585
        %v690 = vpack.c.bf16 %v592, %v590
        %v691 = vpack.c.bf16 %v597, %v595
        %v692 = vpack.c.bf16 %v602, %v600
        %v693 = vpack.c.bf16 %v607, %v605
        %v694 = vpack.c.bf16 %v612, %v610
        %v695 = vpack.c.bf16 %v617, %v615
        %v696 = vpack.c.bf16 %v622, %v620
        %v697 = vpack.c.bf16 %v627, %v625
        %v698 = vpack.c.bf16 %v632, %v630
        %v699 = vpack.c.bf16 %v637, %v635
        %v700 = vpack.c.bf16 %v642, %v640
        %v701 = vpack.c.bf16 %v647, %v645
        %s702 = scalar_lea.vmem [#allocation6], 192
        %v703 = vld [vmem:[%s702] sm:$0xf]
        %v704 = vld [vmem:[%s702 + $0x4] sm:$0xf]
        %v705 = vld [vmem:[%s702 + $0x8] sm:$0xf]
        %v706 = vld [vmem:[%s702 + $0xc] sm:$0xf]
        %v707 = vld [vmem:[%s702 + $0x10] sm:$0xf]
        %v708 = vld [vmem:[%s702 + $0x14] sm:$0xf]
        %v709 = vld [vmem:[%s702 + $0x18] sm:$0xf]
        %v710 = vld [vmem:[%s702 + $0x1c] sm:$0xf]
        %v711 = vld [vmem:[%s702 + $0x20] sm:$0xf]
        %v712 = vld [vmem:[%s702 + $0x24] sm:$0xf]
        %v713 = vld [vmem:[%s702 + $0x28] sm:$0xf]
        %v714 = vld [vmem:[%s702 + $0x2c] sm:$0xf]
        %v715 = vld [vmem:[%s702 + $0x30] sm:$0xf]
        %v716 = vld [vmem:[%s702 + $0x34] sm:$0xf]
        %v717 = vld [vmem:[%s702 + $0x38] sm:$0xf]
        %v718 = vld [vmem:[%s702 + $0x3c] sm:$0xf]
        %v719 = vld [vmem:[%s702 + $0x40] sm:$0xf]
        %v720 = vld [vmem:[%s702 + $0x44] sm:$0xf]
        %v721 = vld [vmem:[%s702 + $0x48] sm:$0xf]
        %v722 = vld [vmem:[%s702 + $0x4c] sm:$0xf]
        %v723 = vld [vmem:[%s702 + $0x50] sm:$0xf]
        %v724 = vld [vmem:[%s702 + $0x54] sm:$0xf]
        %v725 = vld [vmem:[%s702 + $0x58] sm:$0xf]
        %v726 = vld [vmem:[%s702 + $0x5c] sm:$0xf]
        %v727 = vld [vmem:[%s702 + $0x60] sm:$0xf]
        %v728 = vld [vmem:[%s702 + $0x64] sm:$0xf]
        %v729 = vld [vmem:[%s702 + $0x68] sm:$0xf]
        %v730 = vld [vmem:[%s702 + $0x6c] sm:$0xf]
        %v731 = vld [vmem:[%s702 + $0x70] sm:$0xf]
        %v732 = vld [vmem:[%s702 + $0x74] sm:$0xf]
        %v733 = vld [vmem:[%s702 + $0x78] sm:$0xf]
        %v734 = vld [vmem:[%s702 + $0x7c] sm:$0xf]
        %v735 = vld [vmem:[%s702 + $0x80] sm:$0xf]
        %v736 = vld [vmem:[%s702 + $0x84] sm:$0xf]
        %v737 = vld [vmem:[%s702 + $0x88] sm:$0xf]
        %v738 = vld [vmem:[%s702 + $0x8c] sm:$0xf]
        %v739 = vld [vmem:[%s702 + $0x90] sm:$0xf]
        %v740 = vld [vmem:[%s702 + $0x94] sm:$0xf]
        %v741 = vld [vmem:[%s702 + $0x98] sm:$0xf]
        %v742 = vld [vmem:[%s702 + $0x9c] sm:$0xf]
        %v743 = vld [vmem:[%s702 + $0xa0] sm:$0xf]
        %v744 = vld [vmem:[%s702 + $0xa4] sm:$0xf]
        %v745 = vld [vmem:[%s702 + $0xa8] sm:$0xf]
        %v746 = vld [vmem:[%s702 + $0xac] sm:$0xf]
        %v747 = vld [vmem:[%s702 + $0xb0] sm:$0xf]
        %v748 = vld [vmem:[%s702 + $0xb4] sm:$0xf]
        %v749 = vld [vmem:[%s702 + $0xb8] sm:$0xf]
        %v750 = vld [vmem:[%s702 + $0xbc] sm:$0xf]
        %v799 = vunpack.c.l.b16 %v703
        %v800 = vunpack.c.l.b16 %v704
        %v801 = vunpack.c.l.b16 %v705
        %v802 = vunpack.c.l.b16 %v706
        %v803 = vunpack.c.l.b16 %v707
        %v804 = vunpack.c.l.b16 %v708
        %v805 = vunpack.c.l.b16 %v709
        %v806 = vunpack.c.l.b16 %v710
        %v807 = vunpack.c.l.b16 %v711
        %v808 = vunpack.c.l.b16 %v712
        %v809 = vunpack.c.l.b16 %v713
        %v810 = vunpack.c.l.b16 %v714
        %v811 = vunpack.c.l.b16 %v715
        %v812 = vunpack.c.l.b16 %v716
        %v813 = vunpack.c.l.b16 %v717
        %v814 = vunpack.c.l.b16 %v718
        %v815 = vunpack.c.l.b16 %v719
        %v816 = vunpack.c.l.b16 %v720
        %v817 = vunpack.c.l.b16 %v721
        %v818 = vunpack.c.l.b16 %v722
        %v819 = vunpack.c.l.b16 %v723
        %v820 = vunpack.c.l.b16 %v724
        %v821 = vunpack.c.l.b16 %v725
        %v822 = vunpack.c.l.b16 %v726
        %v823 = vunpack.c.l.b16 %v727
        %v824 = vunpack.c.l.b16 %v728
        %v825 = vunpack.c.l.b16 %v729
        %v826 = vunpack.c.l.b16 %v730
        %v827 = vunpack.c.l.b16 %v731
        %v828 = vunpack.c.l.b16 %v732
        %v829 = vunpack.c.l.b16 %v733
        %v830 = vunpack.c.l.b16 %v734
        %v831 = vunpack.c.l.b16 %v735
        %v832 = vunpack.c.l.b16 %v736
        %v833 = vunpack.c.l.b16 %v737
        %v834 = vunpack.c.l.b16 %v738
        %v835 = vunpack.c.l.b16 %v739
        %v836 = vunpack.c.l.b16 %v740
        %v837 = vunpack.c.l.b16 %v741
        %v838 = vunpack.c.l.b16 %v742
        %v839 = vunpack.c.l.b16 %v743
        %v840 = vunpack.c.l.b16 %v744
        %v841 = vunpack.c.l.b16 %v745
        %v842 = vunpack.c.l.b16 %v746
        %v843 = vunpack.c.l.b16 %v747
        %v844 = vunpack.c.l.b16 %v748
        %v845 = vunpack.c.l.b16 %v749
        %v846 = vunpack.c.l.b16 %v750
        %v847 = vpack.c.b16 %v800, %v799
        %v848 = vpack.c.b16 %v802, %v801
        %v849 = vpack.c.b16 %v804, %v803
        %v850 = vpack.c.b16 %v806, %v805
        %v851 = vpack.c.b16 %v808, %v807
        %v852 = vpack.c.b16 %v810, %v809
        %v853 = vpack.c.b16 %v812, %v811
        %v854 = vpack.c.b16 %v814, %v813
        %v855 = vpack.c.b16 %v816, %v815
        %v856 = vpack.c.b16 %v818, %v817
        %v857 = vpack.c.b16 %v820, %v819
        %v858 = vpack.c.b16 %v822, %v821
        %v859 = vpack.c.b16 %v824, %v823
        %v860 = vpack.c.b16 %v826, %v825
        %v861 = vpack.c.b16 %v828, %v827
        %v862 = vpack.c.b16 %v830, %v829
        %v863 = vpack.c.b16 %v832, %v831
        %v864 = vpack.c.b16 %v834, %v833
        %v865 = vpack.c.b16 %v836, %v835
        %v866 = vpack.c.b16 %v838, %v837
        %v867 = vpack.c.b16 %v840, %v839
        %v868 = vpack.c.b16 %v842, %v841
        %v869 = vpack.c.b16 %v844, %v843
        %v870 = vpack.c.b16 %v846, %v845
        %895 = vmatprep.subr.bf16.mxu0 0
        %896 = vmatpush1.bf16.msra.mxu0 %v847
        %897 = vmatprep.subr.bf16.mxu0 0
        %898 = vmatpush1.bf16.msra.mxu0 %v848
        %899 = vmatprep.subr.bf16.mxu0 0
        %900 = vmatpush1.bf16.msra.mxu0 %v849
        %901 = vmatprep.subr.bf16.mxu0 0
        %902 = vmatpush1.bf16.msra.mxu0 %v850
        %903 = vmatprep.subr.bf16.mxu0 0
        %904 = vmatpush1.bf16.msra.mxu0 %v851
        %905 = vmatprep.subr.bf16.mxu0 0
        %906 = vmatpush1.bf16.msra.mxu0 %v852
        %907 = vmatprep.subr.bf16.mxu0 0
        %908 = vmatpush1.bf16.msra.mxu0 %v853
        %909 = vmatprep.subr.bf16.mxu0 0
        %910 = vmatpush1.bf16.msra.mxu0 %v854
        %911 = vmatprep.subr.bf16.mxu0 0
        %912 = vmatpush1.bf16.msra.mxu0 %v855
        %913 = vmatprep.subr.bf16.mxu0 0
        %914 = vmatpush1.bf16.msra.mxu0 %v856
        %915 = vmatprep.subr.bf16.mxu0 0
        %916 = vmatpush1.bf16.msra.mxu0 %v857
        %917 = vmatprep.subr.bf16.mxu0 0
        %918 = vmatpush1.bf16.msra.mxu0 %v858
        %919 = vmatprep.subr.bf16.mxu0 0
        %920 = vmatpush1.bf16.msra.mxu0 %v859
        %921 = vmatprep.subr.bf16.mxu0 0
        %922 = vmatpush1.bf16.msra.mxu0 %v860
        %923 = vmatprep.subr.bf16.mxu0 0
        %924 = vmatpush1.bf16.msra.mxu0 %v861
        %925 = vmatprep.subr.bf16.mxu0 0
        %926 = vmatpush1.bf16.msra.mxu0 %v862
        %927 = vmatprep.mubr.bf16.mxu0 %v685
        %928 = vmatmul.mubr.bf16.gmra.mrb[0].mxu0 %v684
        %v929 = vpop.f32.mrb[0].mxu0
        %v930 = vadd.f32 0.0, %v929
        %v931 = vpop.f32.mrb[0].mxu0
        %v932 = vpop.f32.mrb[0].mxu0
        %v933 = vadd.f32 0.0, %v932
        %v934 = vpop.f32.mrb[0].mxu0
        %935 = vmatprep.mubr.bf16.mxu0 %v686
        %936 = vmatmul.mubr.bf16.gmra.mrb[0].mxu0 %v685
        %v937 = vpop.f32.mrb[0].mxu0
        %v938 = vadd.f32 0.0, %v937
        %v939 = vpop.f32.mrb[0].mxu0
        %v940 = vpop.f32.mrb[0].mxu0
        %v941 = vadd.f32 0.0, %v940
        %v942 = vpop.f32.mrb[0].mxu0
        %943 = vmatprep.mubr.bf16.mxu0 %v687
        %944 = vmatmul.mubr.bf16.gmra.mrb[0].mxu0 %v686
        %v945 = vpop.f32.mrb[0].mxu0
        %v946 = vadd.f32 0.0, %v945
        %v947 = vpop.f32.mrb[0].mxu0
        %v948 = vpop.f32.mrb[0].mxu0
        %v949 = vadd.f32 0.0, %v948
        %v950 = vpop.f32.mrb[0].mxu0
        %951 = vmatprep.mubr.bf16.mxu0 %v688
        %952 = vmatmul.mubr.bf16.gmra.mrb[0].mxu0 %v687
        %v953 = vpop.f32.mrb[0].mxu0
        %v954 = vadd.f32 0.0, %v953
        %v955 = vpop.f32.mrb[0].mxu0
        %v956 = vpop.f32.mrb[0].mxu0
        %v957 = vadd.f32 0.0, %v956
        %v958 = vpop.f32.mrb[0].mxu0
        %959 = vmatprep.mubr.bf16.mxu0 %v689
        %960 = vmatmul.mubr.bf16.gmra.mrb[0].mxu0 %v688
        %v961 = vpop.f32.mrb[0].mxu0
        %v962 = vadd.f32 0.0, %v961
        %v963 = vpop.f32.mrb[0].mxu0
        %v964 = vpop.f32.mrb[0].mxu0
        %v965 = vadd.f32 0.0, %v964
        %v966 = vpop.f32.mrb[0].mxu0
        %967 = vmatprep.mubr.bf16.mxu0 %v690
        %968 = vmatmul.mubr.bf16.gmra.mrb[0].mxu0 %v689
        %v969 = vpop.f32.mrb[0].mxu0
        %v970 = vadd.f32 0.0, %v969
        %v971 = vpop.f32.mrb[0].mxu0
        %v972 = vpop.f32.mrb[0].mxu0
        %v973 = vadd.f32 0.0, %v972
        %v974 = vpop.f32.mrb[0].mxu0
        %975 = vmatprep.mubr.bf16.mxu0 %v691
        %976 = vmatmul.mubr.bf16.gmra.mrb[0].mxu0 %v690
        %v977 = vpop.f32.mrb[0].mxu0
        %v978 = vadd.f32 0.0, %v977
        %v979 = vpop.f32.mrb[0].mxu0
        %v980 = vpop.f32.mrb[0].mxu0
        %v981 = vadd.f32 0.0, %v980
        %v982 = vpop.f32.mrb[0].mxu0
        %983 = vmatprep.mubr.bf16.mxu0 %v692
        %984 = vmatmul.mubr.bf16.gmra.mrb[0].mxu0 %v691
        %v985 = vpop.f32.mrb[0].mxu0
        %v986 = vadd.f32 0.0, %v985
        %v987 = vpop.f32.mrb[0].mxu0
        %v988 = vpop.f32.mrb[0].mxu0
        %v989 = vadd.f32 0.0, %v988
        %v990 = vpop.f32.mrb[0].mxu0
        %991 = vmatprep.mubr.bf16.mxu0 %v693
        %992 = vmatmul.mubr.bf16.gmra.mrb[0].mxu0 %v692
        %v993 = vpop.f32.mrb[0].mxu0
        %v994 = vadd.f32 0.0, %v993
        %v995 = vpop.f32.mrb[0].mxu0
        %v996 = vpop.f32.mrb[0].mxu0
        %v997 = vadd.f32 0.0, %v996
        %v998 = vpop.f32.mrb[0].mxu0
        %999 = vmatprep.mubr.bf16.mxu0 %v694
        %1000 = vmatmul.mubr.bf16.gmra.mrb[0].mxu0 %v693
        %v1001 = vpop.f32.mrb[0].mxu0
        %v1002 = vadd.f32 0.0, %v1001
        %v1003 = vpop.f32.mrb[0].mxu0
        %v1004 = vpop.f32.mrb[0].mxu0
        %v1005 = vadd.f32 0.0, %v1004
        %v1006 = vpop.f32.mrb[0].mxu0
        %1007 = vmatprep.mubr.bf16.mxu0 %v695
        %1008 = vmatmul.mubr.bf16.gmra.mrb[0].mxu0 %v694
        %v1009 = vpop.f32.mrb[0].mxu0
        %v1010 = vadd.f32 0.0, %v1009
        %v1011 = vpop.f32.mrb[0].mxu0
        %v1012 = vpop.f32.mrb[0].mxu0
        %v1013 = vadd.f32 0.0, %v1012
        %v1014 = vpop.f32.mrb[0].mxu0
        %1015 = vmatprep.mubr.bf16.mxu0 %v696
        %1016 = vmatmul.mubr.bf16.gmra.mrb[0].mxu0 %v695
        %v1017 = vpop.f32.mrb[0].mxu0
        %v1018 = vadd.f32 0.0, %v1017
        %v1019 = vpop.f32.mrb[0].mxu0
        %v1020 = vpop.f32.mrb[0].mxu0
        %v1021 = vadd.f32 0.0, %v1020
        %v1022 = vpop.f32.mrb[0].mxu0
        %1023 = vmatprep.mubr.bf16.mxu0 %v697
        %1024 = vmatmul.mubr.bf16.gmra.mrb[0].mxu0 %v696
        %v1025 = vpop.f32.mrb[0].mxu0
        %v1026 = vadd.f32 0.0, %v1025
        %v1027 = vpop.f32.mrb[0].mxu0
        %v1028 = vpop.f32.mrb[0].mxu0
        %v1029 = vadd.f32 0.0, %v1028
        %v1030 = vpop.f32.mrb[0].mxu0
        %1031 = vmatprep.mubr.bf16.mxu0 %v698
        %1032 = vmatmul.mubr.bf16.gmra.mrb[0].mxu0 %v697
        %v1033 = vpop.f32.mrb[0].mxu0
        %v1034 = vadd.f32 0.0, %v1033
        %v1035 = vpop.f32.mrb[0].mxu0
        %v1036 = vpop.f32.mrb[0].mxu0
        %v1037 = vadd.f32 0.0, %v1036
        %v1038 = vpop.f32.mrb[0].mxu0
        %1039 = vmatprep.mubr.bf16.mxu0 %v699
        %1040 = vmatmul.mubr.bf16.gmra.mrb[0].mxu0 %v698
        %v1041 = vpop.f32.mrb[0].mxu0
        %v1042 = vadd.f32 0.0, %v1041
        %v1043 = vpop.f32.mrb[0].mxu0
        %v1044 = vpop.f32.mrb[0].mxu0
        %v1045 = vadd.f32 0.0, %v1044
        %v1046 = vpop.f32.mrb[0].mxu0
        %1047 = vmatprep.mubr.bf16.mxu0 %v700
        %1048 = vmatmul.mubr.bf16.gmra.mrb[0].mxu0 %v699
        %v1049 = vpop.f32.mrb[0].mxu0
        %v1050 = vadd.f32 0.0, %v1049
        %v1051 = vpop.f32.mrb[0].mxu0
        %v1052 = vpop.f32.mrb[0].mxu0
        %v1053 = vadd.f32 0.0, %v1052
        %v1054 = vpop.f32.mrb[0].mxu0
        %1055 = vdwg.mxu0
        %1056 = vmatprep.subr.bf16.mxu0 0
        %1057 = vmatpush1.bf16.msra.mxu0 %v863
        %1058 = vmatprep.subr.bf16.mxu0 0
        %1059 = vmatpush1.bf16.msra.mxu0 %v864
        %1060 = vmatprep.subr.bf16.mxu0 0
        %1061 = vmatpush1.bf16.msra.mxu0 %v865
        %1062 = vmatprep.subr.bf16.mxu0 0
        %1063 = vmatpush1.bf16.msra.mxu0 %v866
        %1064 = vmatprep.subr.bf16.mxu0 0
        %1065 = vmatpush1.bf16.msra.mxu0 %v867
        %1066 = vmatprep.subr.bf16.mxu0 0
        %1067 = vmatpush1.bf16.msra.mxu0 %v868
        %1068 = vmatprep.subr.bf16.mxu0 0
        %1069 = vmatpush1.bf16.msra.mxu0 %v869
        %1070 = vmatprep.subr.bf16.mxu0 0
        %1071 = vmatpush1.bf16.msra.mxu0 %v870
        %1072 = vmatprep.subr.bf16.mxu0 0
        %1073 = vmatpush1.bf16.msra.mxu0 0
        %1074 = vmatprep.subr.bf16.mxu0 0
        %1075 = vmatpush1.bf16.msra.mxu0 0
        %1076 = vmatprep.subr.bf16.mxu0 0
        %1077 = vmatpush1.bf16.msra.mxu0 0
        %1078 = vmatprep.subr.bf16.mxu0 0
        %1079 = vmatpush1.bf16.msra.mxu0 0
        %1080 = vmatprep.subr.bf16.mxu0 0
        %1081 = vmatpush1.bf16.msra.mxu0 0
        %1082 = vmatprep.subr.bf16.mxu0 0
        %1083 = vmatpush1.bf16.msra.mxu0 0
        %1084 = vmatprep.subr.bf16.mxu0 0
        %1085 = vmatpush1.bf16.msra.mxu0 0
        %1086 = vmatprep.subr.bf16.mxu0 0
        %1087 = vmatpush1.bf16.msra.mxu0 0
        %1088 = vmatprep.mubr.bf16.mxu0 0
        %1089 = vmatmul.mubr.bf16.gmra.mrb[0].mxu0 %v686
        %v1090 = vpop.f32.mrb[0].mxu0
        %v1091 = vadd.f32 %v930, %v1090
        %v1092 = vpop.f32.mrb[0].mxu0
        %v1093 = vpop.f32.mrb[0].mxu0
        %v1094 = vadd.f32 %v933, %v1093
        %v1095 = vpop.f32.mrb[0].mxu0
        %1096 = vmatprep.mubr.bf16.mxu0 0
        %1097 = vmatmul.mubr.bf16.gmra.mrb[0].mxu0 %v687
        %v1098 = vpop.f32.mrb[0].mxu0
        %v1099 = vadd.f32 %v938, %v1098
        %v1100 = vpop.f32.mrb[0].mxu0
        %v1101 = vpop.f32.mrb[0].mxu0
        %v1102 = vadd.f32 %v941, %v1101
        %v1103 = vpop.f32.mrb[0].mxu0
        %1104 = vmatprep.mubr.bf16.mxu0 0
        %1105 = vmatmul.mubr.bf16.gmra.mrb[0].mxu0 %v688
        %v1106 = vpop.f32.mrb[0].mxu0
        %v1107 = vadd.f32 %v946, %v1106
        %v1108 = vpop.f32.mrb[0].mxu0
        %v1109 = vpop.f32.mrb[0].mxu0
        %v1110 = vadd.f32 %v949, %v1109
        %v1111 = vpop.f32.mrb[0].mxu0
        %1112 = vmatprep.mubr.bf16.mxu0 0
        %1113 = vmatmul.mubr.bf16.gmra.mrb[0].mxu0 %v689
        %v1114 = vpop.f32.mrb[0].mxu0
        %v1115 = vadd.f32 %v954, %v1114
        %v1116 = vpop.f32.mrb[0].mxu0
        %v1117 = vpop.f32.mrb[0].mxu0
        %v1118 = vadd.f32 %v957, %v1117
        %v1119 = vpop.f32.mrb[0].mxu0
        %1120 = vmatprep.mubr.bf16.mxu0 0
        %1121 = vmatmul.mubr.bf16.gmra.mrb[0].mxu0 %v690
        %v1122 = vpop.f32.mrb[0].mxu0
        %v1123 = vadd.f32 %v962, %v1122
        %v1124 = vpop.f32.mrb[0].mxu0
        %v1125 = vpop.f32.mrb[0].mxu0
        %v1126 = vadd.f32 %v965, %v1125
        %v1127 = vpop.f32.mrb[0].mxu0
        %1128 = vmatprep.mubr.bf16.mxu0 0
        %1129 = vmatmul.mubr.bf16.gmra.mrb[0].mxu0 %v691
        %v1130 = vpop.f32.mrb[0].mxu0
        %v1131 = vadd.f32 %v970, %v1130
        %v1132 = vpop.f32.mrb[0].mxu0
        %v1133 = vpop.f32.mrb[0].mxu0
        %v1134 = vadd.f32 %v973, %v1133
        %v1135 = vpop.f32.mrb[0].mxu0
        %1136 = vmatprep.mubr.bf16.mxu0 0
        %1137 = vmatmul.mubr.bf16.gmra.mrb[0].mxu0 %v692
        %v1138 = vpop.f32.mrb[0].mxu0
        %v1139 = vadd.f32 %v978, %v1138
        %v1140 = vpop.f32.mrb[0].mxu0
        %v1141 = vpop.f32.mrb[0].mxu0
        %v1142 = vadd.f32 %v981, %v1141
        %v1143 = vpop.f32.mrb[0].mxu0
        %1144 = vmatprep.mubr.bf16.mxu0 0
        %1145 = vmatmul.mubr.bf16.gmra.mrb[0].mxu0 %v693
        %v1146 = vpop.f32.mrb[0].mxu0
        %v1147 = vadd.f32 %v986, %v1146
        %v1148 = vpop.f32.mrb[0].mxu0
        %v1149 = vpop.f32.mrb[0].mxu0
        %v1150 = vadd.f32 %v989, %v1149
        %v1151 = vpop.f32.mrb[0].mxu0
        %1152 = vmatprep.mubr.bf16.mxu0 0
        %1153 = vmatmul.mubr.bf16.gmra.mrb[0].mxu0 %v694
        %v1154 = vpop.f32.mrb[0].mxu0
        %v1155 = vadd.f32 %v994, %v1154
        %v1156 = vpop.f32.mrb[0].mxu0
        %v1157 = vpop.f32.mrb[0].mxu0
        %v1158 = vadd.f32 %v997, %v1157
        %v1159 = vpop.f32.mrb[0].mxu0
        %1160 = vmatprep.mubr.bf16.mxu0 0
        %1161 = vmatmul.mubr.bf16.gmra.mrb[0].mxu0 %v695
        %v1162 = vpop.f32.mrb[0].mxu0
        %v1163 = vadd.f32 %v1002, %v1162
        %v1164 = vpop.f32.mrb[0].mxu0
        %v1165 = vpop.f32.mrb[0].mxu0
        %v1166 = vadd.f32 %v1005, %v1165
        %v1167 = vpop.f32.mrb[0].mxu0
        %1168 = vmatprep.mubr.bf16.mxu0 0
        %1169 = vmatmul.mubr.bf16.gmra.mrb[0].mxu0 %v696
        %v1170 = vpop.f32.mrb[0].mxu0
        %v1171 = vadd.f32 %v1010, %v1170
        %v1172 = vpop.f32.mrb[0].mxu0
        %v1173 = vpop.f32.mrb[0].mxu0
        %v1174 = vadd.f32 %v1013, %v1173
        %v1175 = vpop.f32.mrb[0].mxu0
        %1176 = vmatprep.mubr.bf16.mxu0 0
        %1177 = vmatmul.mubr.bf16.gmra.mrb[0].mxu0 %v697
        %v1178 = vpop.f32.mrb[0].mxu0
        %v1179 = vadd.f32 %v1018, %v1178
        %v1180 = vpop.f32.mrb[0].mxu0
        %v1181 = vpop.f32.mrb[0].mxu0
        %v1182 = vadd.f32 %v1021, %v1181
        %v1183 = vpop.f32.mrb[0].mxu0
        %1184 = vmatprep.mubr.bf16.mxu0 0
        %1185 = vmatmul.mubr.bf16.gmra.mrb[0].mxu0 %v698
        %v1186 = vpop.f32.mrb[0].mxu0
        %v1187 = vadd.f32 %v1026, %v1186
        %v1188 = vpop.f32.mrb[0].mxu0
        %v1189 = vpop.f32.mrb[0].mxu0
        %v1190 = vadd.f32 %v1029, %v1189
        %v1191 = vpop.f32.mrb[0].mxu0
        %1192 = vmatprep.mubr.bf16.mxu0 0
        %1193 = vmatmul.mubr.bf16.gmra.mrb[0].mxu0 %v699
        %v1194 = vpop.f32.mrb[0].mxu0
        %v1195 = vadd.f32 %v1034, %v1194
        %v1196 = vpop.f32.mrb[0].mxu0
        %v1197 = vpop.f32.mrb[0].mxu0
        %v1198 = vadd.f32 %v1037, %v1197
        %v1199 = vpop.f32.mrb[0].mxu0
        %1200 = vmatprep.mubr.bf16.mxu0 0
        %1201 = vmatmul.mubr.bf16.gmra.mrb[0].mxu0 %v700
        %v1202 = vpop.f32.mrb[0].mxu0
        %v1203 = vadd.f32 %v1042, %v1202
        %v1204 = vpop.f32.mrb[0].mxu0
        %v1205 = vpop.f32.mrb[0].mxu0
        %v1206 = vadd.f32 %v1045, %v1205
        %v1207 = vpop.f32.mrb[0].mxu0
        %1208 = vmatprep.mubr.bf16.mxu0 0
        %1209 = vmatmul.mubr.bf16.gmra.mrb[0].mxu0 %v701
        %v1210 = vpop.f32.mrb[0].mxu0
        %v1211 = vadd.f32 %v1050, %v1210
        %v1212 = vpop.f32.mrb[0].mxu0
        %v1213 = vpop.f32.mrb[0].mxu0
        %v1214 = vadd.f32 %v1053, %v1213
        %v1215 = vpop.f32.mrb[0].mxu0
        %1216 = vdwg.mxu0
        %v1265 = vunpack.c.l.b16 %v455
        %v1266 = vunpack.c.l.b16 %v456
        %v1267 = vunpack.c.l.b16 %v457
        %v1268 = vunpack.c.l.b16 %v458
        %v1269 = vunpack.c.l.b16 %v459
        %v1270 = vunpack.c.l.b16 %v460
        %v1271 = vunpack.c.l.b16 %v461
        %v1272 = vunpack.c.l.b16 %v462
        %v1273 = vunpack.c.l.b16 %v463
        %v1274 = vunpack.c.l.b16 %v464
        %v1275 = vunpack.c.l.b16 %v465
        %v1276 = vunpack.c.l.b16 %v466
        %v1277 = vunpack.c.l.b16 %v467
        %v1278 = vunpack.c.l.b16 %v468
        %v1279 = vunpack.c.l.b16 %v469
        %v1280 = vunpack.c.l.b16 %v470
        %v1281 = vunpack.c.l.b16 %v471
        %v1282 = vunpack.c.l.b16 %v472
        %v1283 = vunpack.c.l.b16 %v473
        %v1284 = vunpack.c.l.b16 %v474
        %v1285 = vunpack.c.l.b16 %v475
        %v1286 = vunpack.c.l.b16 %v476
        %v1287 = vunpack.c.l.b16 %v477
        %v1288 = vunpack.c.l.b16 %v478
        %v1289 = vunpack.c.l.b16 %v479
        %v1290 = vunpack.c.l.b16 %v480
        %v1291 = vunpack.c.l.b16 %v481
        %v1292 = vunpack.c.l.b16 %v482
        %v1293 = vunpack.c.l.b16 %v483
        %v1294 = vunpack.c.l.b16 %v484
        %v1295 = vunpack.c.l.b16 %v485
        %v1296 = vunpack.c.l.b16 %v486
        %v1297 = vunpack.c.l.b16 %v487
        %v1298 = vunpack.c.l.b16 %v488
        %v1299 = vunpack.c.l.b16 %v489
        %v1300 = vunpack.c.l.b16 %v490
        %v1301 = vunpack.c.l.b16 %v491
        %v1302 = vunpack.c.l.b16 %v492
        %v1303 = vunpack.c.l.b16 %v493
        %v1304 = vunpack.c.l.b16 %v494
        %v1305 = vunpack.c.l.b16 %v495
        %v1306 = vunpack.c.l.b16 %v496
        %v1307 = vunpack.c.l.b16 %v497
        %v1308 = vunpack.c.l.b16 %v498
        %v1309 = vunpack.c.l.b16 %v499
        %v1310 = vunpack.c.l.b16 %v500
        %v1311 = vunpack.c.l.b16 %v501
        %v1312 = vunpack.c.l.b16 %v502
        %v1313 = vpack.c.b16 %v1266, %v1265
        %v1314 = vpack.c.b16 %v1268, %v1267
        %v1315 = vpack.c.b16 %v1270, %v1269
        %v1316 = vpack.c.b16 %v1272, %v1271
        %v1317 = vpack.c.b16 %v1274, %v1273
        %v1318 = vpack.c.b16 %v1276, %v1275
        %v1319 = vpack.c.b16 %v1278, %v1277
        %v1320 = vpack.c.b16 %v1280, %v1279
        %v1321 = vpack.c.b16 %v1282, %v1281
        %v1322 = vpack.c.b16 %v1284, %v1283
        %v1323 = vpack.c.b16 %v1286, %v1285
        %v1324 = vpack.c.b16 %v1288, %v1287
        %v1325 = vpack.c.b16 %v1290, %v1289
        %v1326 = vpack.c.b16 %v1292, %v1291
        %v1327 = vpack.c.b16 %v1294, %v1293
        %v1328 = vpack.c.b16 %v1296, %v1295
        %v1329 = vpack.c.b16 %v1298, %v1297
        %v1330 = vpack.c.b16 %v1300, %v1299
        %v1331 = vpack.c.b16 %v1302, %v1301
        %v1332 = vpack.c.b16 %v1304, %v1303
        %v1333 = vpack.c.b16 %v1306, %v1305
        %v1334 = vpack.c.b16 %v1308, %v1307
        %v1335 = vpack.c.b16 %v1310, %v1309
        %v1336 = vpack.c.b16 %v1312, %v1311
        %1361 = vmatprep.subr.bf16.mxu0 0
        %1362 = vmatpush1.bf16.msra.mxu0 %v1313
        %1363 = vmatprep.subr.bf16.mxu0 0
        %1364 = vmatpush1.bf16.msra.mxu0 %v1314
        %1365 = vmatprep.subr.bf16.mxu0 0
        %1366 = vmatpush1.bf16.msra.mxu0 %v1315
        %1367 = vmatprep.subr.bf16.mxu0 0
        %1368 = vmatpush1.bf16.msra.mxu0 %v1316
        %1369 = vmatprep.subr.bf16.mxu0 0
        %1370 = vmatpush1.bf16.msra.mxu0 %v1317
        %1371 = vmatprep.subr.bf16.mxu0 0
        %1372 = vmatpush1.bf16.msra.mxu0 %v1318
        %1373 = vmatprep.subr.bf16.mxu0 0
        %1374 = vmatpush1.bf16.msra.mxu0 %v1319
        %1375 = vmatprep.subr.bf16.mxu0 0
        %1376 = vmatpush1.bf16.msra.mxu0 %v1320
        %1377 = vmatprep.subr.bf16.mxu0 0
        %1378 = vmatpush1.bf16.msra.mxu0 %v1321
        %1379 = vmatprep.subr.bf16.mxu0 0
        %1380 = vmatpush1.bf16.msra.mxu0 %v1322
        %1381 = vmatprep.subr.bf16.mxu0 0
        %1382 = vmatpush1.bf16.msra.mxu0 %v1323
        %1383 = vmatprep.subr.bf16.mxu0 0
        %1384 = vmatpush1.bf16.msra.mxu0 %v1324
        %1385 = vmatprep.subr.bf16.mxu0 0
        %1386 = vmatpush1.bf16.msra.mxu0 %v1325
        %1387 = vmatprep.subr.bf16.mxu0 0
        %1388 = vmatpush1.bf16.msra.mxu0 %v1326
        %1389 = vmatprep.subr.bf16.mxu0 0
        %1390 = vmatpush1.bf16.msra.mxu0 %v1327
        %1391 = vmatprep.subr.bf16.mxu0 0
        %1392 = vmatpush1.bf16.msra.mxu0 %v1328
        %1393 = vmatprep.mubr.bf16.mxu0 %v438
        %1394 = vmatmul.mubr.bf16.gmra.mrb[0].mxu0 %v437
        %v1395 = vpop.f32.mrb[0].mxu0
        %v1396 = vadd.f32 %v1091, %v1395
        %v1397 = vpop.f32.mrb[0].mxu0
        %v1398 = vpop.f32.mrb[0].mxu0
        %v1399 = vadd.f32 %v1094, %v1398
        %v1400 = vpop.f32.mrb[0].mxu0
        %1401 = vmatprep.mubr.bf16.mxu0 %v439
        %1402 = vmatmul.mubr.bf16.gmra.mrb[0].mxu0 %v438
        %v1403 = vpop.f32.mrb[0].mxu0
        %v1404 = vadd.f32 %v1099, %v1403
        %v1405 = vpop.f32.mrb[0].mxu0
        %v1406 = vpop.f32.mrb[0].mxu0
        %v1407 = vadd.f32 %v1102, %v1406
        %v1408 = vpop.f32.mrb[0].mxu0
        %1409 = vmatprep.mubr.bf16.mxu0 %v440
        %1410 = vmatmul.mubr.bf16.gmra.mrb[0].mxu0 %v439
        %v1411 = vpop.f32.mrb[0].mxu0
        %v1412 = vadd.f32 %v1107, %v1411
        %v1413 = vpop.f32.mrb[0].mxu0
        %v1414 = vpop.f32.mrb[0].mxu0
        %v1415 = vadd.f32 %v1110, %v1414
        %v1416 = vpop.f32.mrb[0].mxu0
        %1417 = vmatprep.mubr.bf16.mxu0 %v441
        %1418 = vmatmul.mubr.bf16.gmra.mrb[0].mxu0 %v440
        %v1419 = vpop.f32.mrb[0].mxu0
        %v1420 = vadd.f32 %v1115, %v1419
        %v1421 = vpop.f32.mrb[0].mxu0
        %v1422 = vpop.f32.mrb[0].mxu0
        %v1423 = vadd.f32 %v1118, %v1422
        %v1424 = vpop.f32.mrb[0].mxu0
        %1425 = vmatprep.mubr.bf16.mxu0 %v442
        %1426 = vmatmul.mubr.bf16.gmra.mrb[0].mxu0 %v441
        %v1427 = vpop.f32.mrb[0].mxu0
        %v1428 = vadd.f32 %v1123, %v1427
        %v1429 = vpop.f32.mrb[0].mxu0
        %v1430 = vpop.f32.mrb[0].mxu0
        %v1431 = vadd.f32 %v1126, %v1430
        %v1432 = vpop.f32.mrb[0].mxu0
        %1433 = vmatprep.mubr.bf16.mxu0 %v443
        %1434 = vmatmul.mubr.bf16.gmra.mrb[0].mxu0 %v442
        %v1435 = vpop.f32.mrb[0].mxu0
        %v1436 = vadd.f32 %v1131, %v1435
        %v1437 = vpop.f32.mrb[0].mxu0
        %v1438 = vpop.f32.mrb[0].mxu0
        %v1439 = vadd.f32 %v1134, %v1438
        %v1440 = vpop.f32.mrb[0].mxu0
        %1441 = vmatprep.mubr.bf16.mxu0 %v444
        %1442 = vmatmul.mubr.bf16.gmra.mrb[0].mxu0 %v443
        %v1443 = vpop.f32.mrb[0].mxu0
        %v1444 = vadd.f32 %v1139, %v1443
        %v1445 = vpop.f32.mrb[0].mxu0
        %v1446 = vpop.f32.mrb[0].mxu0
        %v1447 = vadd.f32 %v1142, %v1446
        %v1448 = vpop.f32.mrb[0].mxu0
        %1449 = vmatprep.mubr.bf16.mxu0 %v445
        %1450 = vmatmul.mubr.bf16.gmra.mrb[0].mxu0 %v444
        %v1451 = vpop.f32.mrb[0].mxu0
        %v1452 = vadd.f32 %v1147, %v1451
        %v1453 = vpop.f32.mrb[0].mxu0
        %v1454 = vpop.f32.mrb[0].mxu0
        %v1455 = vadd.f32 %v1150, %v1454
        %v1456 = vpop.f32.mrb[0].mxu0
        %1457 = vmatprep.mubr.bf16.mxu0 %v446
        %1458 = vmatmul.mubr.bf16.gmra.mrb[0].mxu0 %v445
        %v1459 = vpop.f32.mrb[0].mxu0
        %v1460 = vadd.f32 %v1155, %v1459
        %v1461 = vpop.f32.mrb[0].mxu0
        %v1462 = vpop.f32.mrb[0].mxu0
        %v1463 = vadd.f32 %v1158, %v1462
        %v1464 = vpop.f32.mrb[0].mxu0
        %1465 = vmatprep.mubr.bf16.mxu0 %v447
        %1466 = vmatmul.mubr.bf16.gmra.mrb[0].mxu0 %v446
        %v1467 = vpop.f32.mrb[0].mxu0
        %v1468 = vadd.f32 %v1163, %v1467
        %v1469 = vpop.f32.mrb[0].mxu0
        %v1470 = vpop.f32.mrb[0].mxu0
        %v1471 = vadd.f32 %v1166, %v1470
        %v1472 = vpop.f32.mrb[0].mxu0
        %1473 = vmatprep.mubr.bf16.mxu0 %v448
        %1474 = vmatmul.mubr.bf16.gmra.mrb[0].mxu0 %v447
        %v1475 = vpop.f32.mrb[0].mxu0
        %v1476 = vadd.f32 %v1171, %v1475
        %v1477 = vpop.f32.mrb[0].mxu0
        %v1478 = vpop.f32.mrb[0].mxu0
        %v1479 = vadd.f32 %v1174, %v1478
        %v1480 = vpop.f32.mrb[0].mxu0
        %1481 = vmatprep.mubr.bf16.mxu0 %v449
        %1482 = vmatmul.mubr.bf16.gmra.mrb[0].mxu0 %v448
        %v1483 = vpop.f32.mrb[0].mxu0
        %v1484 = vadd.f32 %v1179, %v1483
        %v1485 = vpop.f32.mrb[0].mxu0
        %v1486 = vpop.f32.mrb[0].mxu0
        %v1487 = vadd.f32 %v1182, %v1486
        %v1488 = vpop.f32.mrb[0].mxu0
        %1489 = vmatprep.mubr.bf16.mxu0 %v450
        %1490 = vmatmul.mubr.bf16.gmra.mrb[0].mxu0 %v449
        %v1491 = vpop.f32.mrb[0].mxu0
        %v1492 = vadd.f32 %v1187, %v1491
        %v1493 = vpop.f32.mrb[0].mxu0
        %v1494 = vpop.f32.mrb[0].mxu0
        %v1495 = vadd.f32 %v1190, %v1494
        %v1496 = vpop.f32.mrb[0].mxu0
        %1497 = vmatprep.mubr.bf16.mxu0 %v451
        %1498 = vmatmul.mubr.bf16.gmra.mrb[0].mxu0 %v450
        %v1499 = vpop.f32.mrb[0].mxu0
        %v1500 = vadd.f32 %v1195, %v1499
        %v1501 = vpop.f32.mrb[0].mxu0
        %v1502 = vpop.f32.mrb[0].mxu0
        %v1503 = vadd.f32 %v1198, %v1502
        %v1504 = vpop.f32.mrb[0].mxu0
        %1505 = vmatprep.mubr.bf16.mxu0 %v452
        %1506 = vmatmul.mubr.bf16.gmra.mrb[0].mxu0 %v451
        %v1507 = vpop.f32.mrb[0].mxu0
        %v1508 = vadd.f32 %v1203, %v1507
        %v1509 = vpop.f32.mrb[0].mxu0
        %v1510 = vpop.f32.mrb[0].mxu0
        %v1511 = vadd.f32 %v1206, %v1510
        %v1512 = vpop.f32.mrb[0].mxu0
        %1513 = vmatprep.mubr.bf16.mxu0 %v453
        %1514 = vmatmul.mubr.bf16.gmra.mrb[0].mxu0 %v452
        %v1515 = vpop.f32.mrb[0].mxu0
        %v1516 = vadd.f32 %v1211, %v1515
        %v1517 = vpop.f32.mrb[0].mxu0
        %v1518 = vpop.f32.mrb[0].mxu0
        %v1519 = vadd.f32 %v1214, %v1518
        %v1520 = vpop.f32.mrb[0].mxu0
        %1521 = vdwg.mxu0
        %1522 = vmatprep.subr.bf16.mxu0 0
        %1523 = vmatpush1.bf16.msra.mxu0 %v1329
        %1524 = vmatprep.subr.bf16.mxu0 0
        %1525 = vmatpush1.bf16.msra.mxu0 %v1330
        %1526 = vmatprep.subr.bf16.mxu0 0
        %1527 = vmatpush1.bf16.msra.mxu0 %v1331
        %1528 = vmatprep.subr.bf16.mxu0 0
        %1529 = vmatpush1.bf16.msra.mxu0 %v1332
        %1530 = vmatprep.subr.bf16.mxu0 0
        %1531 = vmatpush1.bf16.msra.mxu0 %v1333
        %1532 = vmatprep.subr.bf16.mxu0 0
        %1533 = vmatpush1.bf16.msra.mxu0 %v1334
        %1534 = vmatprep.subr.bf16.mxu0 0
        %1535 = vmatpush1.bf16.msra.mxu0 %v1335
        %1536 = vmatprep.subr.bf16.mxu0 0
        %1537 = vmatpush1.bf16.msra.mxu0 %v1336
        %1538 = vmatprep.subr.bf16.mxu0 0
        %1539 = vmatpush1.bf16.msra.mxu0 0
        %1540 = vmatprep.subr.bf16.mxu0 0
        %1541 = vmatpush1.bf16.msra.mxu0 0
        %1542 = vmatprep.subr.bf16.mxu0 0
        %1543 = vmatpush1.bf16.msra.mxu0 0
        %1544 = vmatprep.subr.bf16.mxu0 0
        %1545 = vmatpush1.bf16.msra.mxu0 0
        %1546 = vmatprep.subr.bf16.mxu0 0
        %1547 = vmatpush1.bf16.msra.mxu0 0
        %1548 = vmatprep.subr.bf16.mxu0 0
        %1549 = vmatpush1.bf16.msra.mxu0 0
        %1550 = vmatprep.subr.bf16.mxu0 0
        %1551 = vmatpush1.bf16.msra.mxu0 0
        %1552 = vmatprep.subr.bf16.mxu0 0
        %1553 = vmatpush1.bf16.msra.mxu0 0
        %1554 = vmatprep.mubr.bf16.mxu0 0
        %1555 = vmatmul.mubr.bf16.gmra.mrb[0].mxu0 %v439
        %v1556 = vpop.f32.mrb[0].mxu0
        %v1557 = vadd.f32 %v1396, %v1556
        %v1558 = vpop.f32.mrb[0].mxu0
        %v1559 = vpop.f32.mrb[0].mxu0
        %v1560 = vadd.f32 %v1399, %v1559
        %v1561 = vpop.f32.mrb[0].mxu0
        %1562 = vmatprep.mubr.bf16.mxu0 0
        %1563 = vmatmul.mubr.bf16.gmra.mrb[0].mxu0 %v440
        %v1564 = vpop.f32.mrb[0].mxu0
        %v1565 = vadd.f32 %v1404, %v1564
        %v1566 = vpop.f32.mrb[0].mxu0
        %v1567 = vpop.f32.mrb[0].mxu0
        %v1568 = vadd.f32 %v1407, %v1567
        %v1569 = vpop.f32.mrb[0].mxu0
        %1570 = vmatprep.mubr.bf16.mxu0 0
        %1571 = vmatmul.mubr.bf16.gmra.mrb[0].mxu0 %v441
        %v1572 = vpop.f32.mrb[0].mxu0
        %v1573 = vadd.f32 %v1412, %v1572
        %v1574 = vpop.f32.mrb[0].mxu0
        %v1575 = vpop.f32.mrb[0].mxu0
        %v1576 = vadd.f32 %v1415, %v1575
        %v1577 = vpop.f32.mrb[0].mxu0
        %1578 = vmatprep.mubr.bf16.mxu0 0
        %1579 = vmatmul.mubr.bf16.gmra.mrb[0].mxu0 %v442
        %v1580 = vpop.f32.mrb[0].mxu0
        %v1581 = vadd.f32 %v1420, %v1580
        %v1582 = vpop.f32.mrb[0].mxu0
        %v1583 = vpop.f32.mrb[0].mxu0
        %v1584 = vadd.f32 %v1423, %v1583
        %v1585 = vpop.f32.mrb[0].mxu0
        %1586 = vmatprep.mubr.bf16.mxu0 0
        %1587 = vmatmul.mubr.bf16.gmra.mrb[0].mxu0 %v443
        %v1588 = vpop.f32.mrb[0].mxu0
        %v1589 = vadd.f32 %v1428, %v1588
        %v1590 = vpop.f32.mrb[0].mxu0
        %v1591 = vpop.f32.mrb[0].mxu0
        %v1592 = vadd.f32 %v1431, %v1591
        %v1593 = vpop.f32.mrb[0].mxu0
        %1594 = vmatprep.mubr.bf16.mxu0 0
        %1595 = vmatmul.mubr.bf16.gmra.mrb[0].mxu0 %v444
        %v1596 = vpop.f32.mrb[0].mxu0
        %v1597 = vadd.f32 %v1436, %v1596
        %v1598 = vpop.f32.mrb[0].mxu0
        %v1599 = vpop.f32.mrb[0].mxu0
        %v1600 = vadd.f32 %v1439, %v1599
        %v1601 = vpop.f32.mrb[0].mxu0
        %1602 = vmatprep.mubr.bf16.mxu0 0
        %1603 = vmatmul.mubr.bf16.gmra.mrb[0].mxu0 %v445
        %v1604 = vpop.f32.mrb[0].mxu0
        %v1605 = vadd.f32 %v1444, %v1604
        %v1606 = vpop.f32.mrb[0].mxu0
        %v1607 = vpop.f32.mrb[0].mxu0
        %v1608 = vadd.f32 %v1447, %v1607
        %v1609 = vpop.f32.mrb[0].mxu0
        %1610 = vmatprep.mubr.bf16.mxu0 0
        %1611 = vmatmul.mubr.bf16.gmra.mrb[0].mxu0 %v446
        %v1612 = vpop.f32.mrb[0].mxu0
        %v1613 = vadd.f32 %v1452, %v1612
        %v1614 = vpop.f32.mrb[0].mxu0
        %v1615 = vpop.f32.mrb[0].mxu0
        %v1616 = vadd.f32 %v1455, %v1615
        %v1617 = vpop.f32.mrb[0].mxu0
        %1618 = vmatprep.mubr.bf16.mxu0 0
        %1619 = vmatmul.mubr.bf16.gmra.mrb[0].mxu0 %v447
        %v1620 = vpop.f32.mrb[0].mxu0
        %v1621 = vadd.f32 %v1460, %v1620
        %v1622 = vpop.f32.mrb[0].mxu0
        %v1623 = vpop.f32.mrb[0].mxu0
        %v1624 = vadd.f32 %v1463, %v1623
        %v1625 = vpop.f32.mrb[0].mxu0
        %1626 = vmatprep.mubr.bf16.mxu0 0
        %1627 = vmatmul.mubr.bf16.gmra.mrb[0].mxu0 %v448
        %v1628 = vpop.f32.mrb[0].mxu0
        %v1629 = vadd.f32 %v1468, %v1628
        %v1630 = vpop.f32.mrb[0].mxu0
        %v1631 = vpop.f32.mrb[0].mxu0
        %v1632 = vadd.f32 %v1471, %v1631
        %v1633 = vpop.f32.mrb[0].mxu0
        %1634 = vmatprep.mubr.bf16.mxu0 0
        %1635 = vmatmul.mubr.bf16.gmra.mrb[0].mxu0 %v449
        %v1636 = vpop.f32.mrb[0].mxu0
        %v1637 = vadd.f32 %v1476, %v1636
        %v1638 = vpop.f32.mrb[0].mxu0
        %v1639 = vpop.f32.mrb[0].mxu0
        %v1640 = vadd.f32 %v1479, %v1639
        %v1641 = vpop.f32.mrb[0].mxu0
        %1642 = vmatprep.mubr.bf16.mxu0 0
        %1643 = vmatmul.mubr.bf16.gmra.mrb[0].mxu0 %v450
        %v1644 = vpop.f32.mrb[0].mxu0
        %v1645 = vadd.f32 %v1484, %v1644
        %v1646 = vpop.f32.mrb[0].mxu0
        %v1647 = vpop.f32.mrb[0].mxu0
        %v1648 = vadd.f32 %v1487, %v1647
        %v1649 = vpop.f32.mrb[0].mxu0
        %1650 = vmatprep.mubr.bf16.mxu0 0
        %1651 = vmatmul.mubr.bf16.gmra.mrb[0].mxu0 %v451
        %v1652 = vpop.f32.mrb[0].mxu0
        %v1653 = vadd.f32 %v1492, %v1652
        %v1654 = vpop.f32.mrb[0].mxu0
        %v1655 = vpop.f32.mrb[0].mxu0
        %v1656 = vadd.f32 %v1495, %v1655
        %v1657 = vpop.f32.mrb[0].mxu0
        %1658 = vmatprep.mubr.bf16.mxu0 0
        %1659 = vmatmul.mubr.bf16.gmra.mrb[0].mxu0 %v452
        %v1660 = vpop.f32.mrb[0].mxu0
        %v1661 = vadd.f32 %v1500, %v1660
        %v1662 = vpop.f32.mrb[0].mxu0
        %v1663 = vpop.f32.mrb[0].mxu0
        %v1664 = vadd.f32 %v1503, %v1663
        %v1665 = vpop.f32.mrb[0].mxu0
        %1666 = vmatprep.mubr.bf16.mxu0 0
        %1667 = vmatmul.mubr.bf16.gmra.mrb[0].mxu0 %v453
        %v1668 = vpop.f32.mrb[0].mxu0
        %v1669 = vadd.f32 %v1508, %v1668
        %v1670 = vpop.f32.mrb[0].mxu0
        %v1671 = vpop.f32.mrb[0].mxu0
        %v1672 = vadd.f32 %v1511, %v1671
        %v1673 = vpop.f32.mrb[0].mxu0
        %1674 = vmatprep.mubr.bf16.mxu0 0
        %1675 = vmatmul.mubr.bf16.gmra.mrb[0].mxu0 %v454
        %v1676 = vpop.f32.mrb[0].mxu0
        %v1677 = vadd.f32 %v1516, %v1676
        %v1678 = vpop.f32.mrb[0].mxu0
        %v1679 = vpop.f32.mrb[0].mxu0
        %v1680 = vadd.f32 %v1519, %v1679
        %v1681 = vpop.f32.mrb[0].mxu0
        %1682 = vdwg.mxu0
        %vm1683 = vcmask 1045504
        %v1684 = vrot.slane %v383, 2
        %v1685 = vrot.slane %v384, 2
        %v1686 = vsel %vm1683, %v1684, %v1685
        %v1687 = vrot.slane %v386, 2
        %v1688 = vrot.slane %v387, 2
        %v1689 = vsel %vm1683, %v1687, %v1688
        %v1690 = vrot.slane %v389, 2
        %v1691 = vrot.slane %v390, 2
        %v1692 = vsel %vm1683, %v1690, %v1691
        %v1693 = vrot.slane %v385, 2
        %v1694 = vsel %vm1683, %v1685, %v1693
        %v1695 = vrot.slane %v388, 2
        %v1696 = vsel %vm1683, %v1688, %v1695
        %v1697 = vrot.slane %v391, 2
        %v1698 = vsel %vm1683, %v1691, %v1697
        %v1699 = vrot.slane %v392, 2
        %v1700 = vrot.slane %v393, 2
        %v1701 = vsel %vm1683, %v1699, %v1700
        %v1702 = vrot.slane %v394, 2
        %v1703 = vsel %vm1683, %v1700, %v1702
        %v1704 = vrot.slane %v395, 2
        %v1705 = vrot.slane %v396, 2
        %v1706 = vsel %vm1683, %v1704, %v1705
        %v1707 = vrot.slane %v397, 2
        %v1708 = vsel %vm1683, %v1705, %v1707
        %v1709 = vrot.slane %v398, 2
        %v1710 = vrot.slane %v399, 2
        %v1711 = vsel %vm1683, %v1709, %v1710
        %v1712 = vrot.slane %v400, 2
        %v1713 = vsel %vm1683, %v1710, %v1712
        %v1714 = vrot.slane %v401, 2
        %v1715 = vrot.slane %v402, 2
        %v1716 = vsel %vm1683, %v1714, %v1715
        %v1717 = vrot.slane %v403, 2
        %v1718 = vsel %vm1683, %v1715, %v1717
        %v1719 = vrot.slane %v404, 2
        %v1720 = vrot.slane %v405, 2
        %v1721 = vsel %vm1683, %v1719, %v1720
        %v1722 = vrot.slane %v406, 2
        %v1723 = vsel %vm1683, %v1720, %v1722
        %v1724 = vrot.slane %v407, 2
        %v1725 = vrot.slane %v408, 2
        %v1726 = vsel %vm1683, %v1724, %v1725
        %v1727 = vrot.slane %v409, 2
        %v1728 = vsel %vm1683, %v1725, %v1727
        %v1729 = vrot.slane %v410, 2
        %v1730 = vrot.slane %v411, 2
        %v1731 = vsel %vm1683, %v1729, %v1730
        %v1732 = vrot.slane %v412, 2
        %v1733 = vsel %vm1683, %v1730, %v1732
        %v1734 = vrot.slane %v413, 2
        %v1735 = vrot.slane %v414, 2
        %v1736 = vsel %vm1683, %v1734, %v1735
        %v1737 = vrot.slane %v415, 2
        %v1738 = vsel %vm1683, %v1735, %v1737
        %v1739 = vrot.slane %v416, 2
        %v1740 = vrot.slane %v417, 2
        %v1741 = vsel %vm1683, %v1739, %v1740
        %v1742 = vrot.slane %v418, 2
        %v1743 = vsel %vm1683, %v1740, %v1742
        %v1744 = vrot.slane %v419, 2
        %v1745 = vrot.slane %v420, 2
        %v1746 = vsel %vm1683, %v1744, %v1745
        %v1747 = vrot.slane %v421, 2
        %v1748 = vsel %vm1683, %v1745, %v1747
        %v1749 = vrot.slane %v422, 2
        %v1750 = vrot.slane %v423, 2
        %v1751 = vsel %vm1683, %v1749, %v1750
        %v1752 = vrot.slane %v424, 2
        %v1753 = vsel %vm1683, %v1750, %v1752
        %v1754 = vrot.slane %v425, 2
        %v1755 = vrot.slane %v426, 2
        %v1756 = vsel %vm1683, %v1754, %v1755
        %v1757 = vrot.slane %v427, 2
        %v1758 = vsel %vm1683, %v1755, %v1757
        %v1759 = vrot.slane %v428, 2
        %v1760 = vrot.slane %v429, 2
        %v1761 = vsel %vm1683, %v1759, %v1760
        %v1762 = vrot.slane %v430, 2
        %v1763 = vsel %vm1683, %v1760, %v1762
        %v1764 = vrot.slane %v431, 2
        %v1765 = vrot.slane %v432, 2
        %v1766 = vsel %vm1683, %v1764, %v1765
        %v1767 = vrot.slane %v433, 2
        %v1768 = vsel %vm1683, %v1765, %v1767
        %v1769 = vrot.slane %v434, 2
        %v1770 = vrot.slane %v435, 2
        %v1771 = vsel %vm1683, %v1769, %v1770
        %v1772 = vrot.slane %v436, 2
        %v1773 = vsel %vm1683, %v1770, %v1772
        %v1810 = vpack.c.bf16 %v1694, %v1686
        %v1811 = vpack.c.bf16 %v1696, %v1689
        %v1812 = vpack.c.bf16 %v1698, %v1692
        %v1813 = vpack.c.bf16 %v1703, %v1701
        %v1814 = vpack.c.bf16 %v1708, %v1706
        %v1815 = vpack.c.bf16 %v1713, %v1711
        %v1816 = vpack.c.bf16 %v1718, %v1716
        %v1817 = vpack.c.bf16 %v1723, %v1721
        %v1818 = vpack.c.bf16 %v1728, %v1726
        %v1819 = vpack.c.bf16 %v1733, %v1731
        %v1820 = vpack.c.bf16 %v1738, %v1736
        %v1821 = vpack.c.bf16 %v1743, %v1741
        %v1822 = vpack.c.bf16 %v1748, %v1746
        %v1823 = vpack.c.bf16 %v1753, %v1751
        %v1824 = vpack.c.bf16 %v1758, %v1756
        %v1825 = vpack.c.bf16 %v1763, %v1761
        %v1826 = vpack.c.bf16 %v1768, %v1766
        %v1827 = vpack.c.bf16 %v1773, %v1771
        %s1828 = scalar_lea.vmem [#allocation6], 384
        %v1829 = vld [vmem:[%s1828] sm:$0xf]
        %v1830 = vld [vmem:[%s1828 + $0x4] sm:$0xf]
        %v1831 = vld [vmem:[%s1828 + $0x8] sm:$0xf]
        %v1832 = vld [vmem:[%s1828 + $0xc] sm:$0xf]
        %v1833 = vld [vmem:[%s1828 + $0x10] sm:$0xf]
        %v1834 = vld [vmem:[%s1828 + $0x14] sm:$0xf]
        %v1835 = vld [vmem:[%s1828 + $0x18] sm:$0xf]
        %v1836 = vld [vmem:[%s1828 + $0x1c] sm:$0xf]
        %v1837 = vld [vmem:[%s1828 + $0x20] sm:$0xf]
        %v1838 = vld [vmem:[%s1828 + $0x24] sm:$0xf]
        %v1839 = vld [vmem:[%s1828 + $0x28] sm:$0xf]
        %v1840 = vld [vmem:[%s1828 + $0x2c] sm:$0xf]
        %v1841 = vld [vmem:[%s1828 + $0x30] sm:$0xf]
        %v1842 = vld [vmem:[%s1828 + $0x34] sm:$0xf]
        %v1843 = vld [vmem:[%s1828 + $0x38] sm:$0xf]
        %v1844 = vld [vmem:[%s1828 + $0x3c] sm:$0xf]
        %v1845 = vld [vmem:[%s1828 + $0x40] sm:$0xf]
        %v1846 = vld [vmem:[%s1828 + $0x44] sm:$0xf]
        %v1847 = vld [vmem:[%s1828 + $0x48] sm:$0xf]
        %v1848 = vld [vmem:[%s1828 + $0x4c] sm:$0xf]
        %v1849 = vld [vmem:[%s1828 + $0x50] sm:$0xf]
        %v1850 = vld [vmem:[%s1828 + $0x54] sm:$0xf]
        %v1851 = vld [vmem:[%s1828 + $0x58] sm:$0xf]
        %v1852 = vld [vmem:[%s1828 + $0x5c] sm:$0xf]
        %v1853 = vld [vmem:[%s1828 + $0x60] sm:$0xf]
        %v1854 = vld [vmem:[%s1828 + $0x64] sm:$0xf]
        %v1855 = vld [vmem:[%s1828 + $0x68] sm:$0xf]
        %v1856 = vld [vmem:[%s1828 + $0x6c] sm:$0xf]
        %v1857 = vld [vmem:[%s1828 + $0x70] sm:$0xf]
        %v1858 = vld [vmem:[%s1828 + $0x74] sm:$0xf]
        %v1859 = vld [vmem:[%s1828 + $0x78] sm:$0xf]
        %v1860 = vld [vmem:[%s1828 + $0x7c] sm:$0xf]
        %v1861 = vld [vmem:[%s1828 + $0x80] sm:$0xf]
        %v1862 = vld [vmem:[%s1828 + $0x84] sm:$0xf]
        %v1863 = vld [vmem:[%s1828 + $0x88] sm:$0xf]
        %v1864 = vld [vmem:[%s1828 + $0x8c] sm:$0xf]
        %v1865 = vld [vmem:[%s1828 + $0x90] sm:$0xf]
        %v1866 = vld [vmem:[%s1828 + $0x94] sm:$0xf]
        %v1867 = vld [vmem:[%s1828 + $0x98] sm:$0xf]
        %v1868 = vld [vmem:[%s1828 + $0x9c] sm:$0xf]
        %v1869 = vld [vmem:[%s1828 + $0xa0] sm:$0xf]
        %v1870 = vld [vmem:[%s1828 + $0xa4] sm:$0xf]
        %v1871 = vld [vmem:[%s1828 + $0xa8] sm:$0xf]
        %v1872 = vld [vmem:[%s1828 + $0xac] sm:$0xf]
        %v1873 = vld [vmem:[%s1828 + $0xb0] sm:$0xf]
        %v1874 = vld [vmem:[%s1828 + $0xb4] sm:$0xf]
        %v1875 = vld [vmem:[%s1828 + $0xb8] sm:$0xf]
        %v1876 = vld [vmem:[%s1828 + $0xbc] sm:$0xf]
        %v1925 = vunpack.c.l.b16 %v1829
        %v1926 = vunpack.c.l.b16 %v1830
        %v1927 = vunpack.c.l.b16 %v1831
        %v1928 = vunpack.c.l.b16 %v1832
        %v1929 = vunpack.c.l.b16 %v1833
        %v1930 = vunpack.c.l.b16 %v1834
        %v1931 = vunpack.c.l.b16 %v1835
        %v1932 = vunpack.c.l.b16 %v1836
        %v1933 = vunpack.c.l.b16 %v1837
        %v1934 = vunpack.c.l.b16 %v1838
        %v1935 = vunpack.c.l.b16 %v1839
        %v1936 = vunpack.c.l.b16 %v1840
        %v1937 = vunpack.c.l.b16 %v1841
        %v1938 = vunpack.c.l.b16 %v1842
        %v1939 = vunpack.c.l.b16 %v1843
        %v1940 = vunpack.c.l.b16 %v1844
        %v1941 = vunpack.c.l.b16 %v1845
        %v1942 = vunpack.c.l.b16 %v1846
        %v1943 = vunpack.c.l.b16 %v1847
        %v1944 = vunpack.c.l.b16 %v1848
        %v1945 = vunpack.c.l.b16 %v1849
        %v1946 = vunpack.c.l.b16 %v1850
        %v1947 = vunpack.c.l.b16 %v1851
        %v1948 = vunpack.c.l.b16 %v1852
        %v1949 = vunpack.c.l.b16 %v1853
        %v1950 = vunpack.c.l.b16 %v1854
        %v1951 = vunpack.c.l.b16 %v1855
        %v1952 = vunpack.c.l.b16 %v1856
        %v1953 = vunpack.c.l.b16 %v1857
        %v1954 = vunpack.c.l.b16 %v1858
        %v1955 = vunpack.c.l.b16 %v1859
        %v1956 = vunpack.c.l.b16 %v1860
        %v1957 = vunpack.c.l.b16 %v1861
        %v1958 = vunpack.c.l.b16 %v1862
        %v1959 = vunpack.c.l.b16 %v1863
        %v1960 = vunpack.c.l.b16 %v1864
        %v1961 = vunpack.c.l.b16 %v1865
        %v1962 = vunpack.c.l.b16 %v1866
        %v1963 = vunpack.c.l.b16 %v1867
        %v1964 = vunpack.c.l.b16 %v1868
        %v1965 = vunpack.c.l.b16 %v1869
        %v1966 = vunpack.c.l.b16 %v1870
        %v1967 = vunpack.c.l.b16 %v1871
        %v1968 = vunpack.c.l.b16 %v1872
        %v1969 = vunpack.c.l.b16 %v1873
        %v1970 = vunpack.c.l.b16 %v1874
        %v1971 = vunpack.c.l.b16 %v1875
        %v1972 = vunpack.c.l.b16 %v1876
        %v1973 = vpack.c.b16 %v1926, %v1925
        %v1974 = vpack.c.b16 %v1928, %v1927
        %v1975 = vpack.c.b16 %v1930, %v1929
        %v1976 = vpack.c.b16 %v1932, %v1931
        %v1977 = vpack.c.b16 %v1934, %v1933
        %v1978 = vpack.c.b16 %v1936, %v1935
        %v1979 = vpack.c.b16 %v1938, %v1937
        %v1980 = vpack.c.b16 %v1940, %v1939
        %v1981 = vpack.c.b16 %v1942, %v1941
        %v1982 = vpack.c.b16 %v1944, %v1943
        %v1983 = vpack.c.b16 %v1946, %v1945
        %v1984 = vpack.c.b16 %v1948, %v1947
        %v1985 = vpack.c.b16 %v1950, %v1949
        %v1986 = vpack.c.b16 %v1952, %v1951
        %v1987 = vpack.c.b16 %v1954, %v1953
        %v1988 = vpack.c.b16 %v1956, %v1955
        %v1989 = vpack.c.b16 %v1958, %v1957
        %v1990 = vpack.c.b16 %v1960, %v1959
        %v1991 = vpack.c.b16 %v1962, %v1961
        %v1992 = vpack.c.b16 %v1964, %v1963
        %v1993 = vpack.c.b16 %v1966, %v1965
        %v1994 = vpack.c.b16 %v1968, %v1967
        %v1995 = vpack.c.b16 %v1970, %v1969
        %v1996 = vpack.c.b16 %v1972, %v1971
        %2021 = vmatprep.subr.bf16.mxu0 0
        %2022 = vmatpush1.bf16.msra.mxu0 %v1973
        %2023 = vmatprep.subr.bf16.mxu0 0
        %2024 = vmatpush1.bf16.msra.mxu0 %v1974
        %2025 = vmatprep.subr.bf16.mxu0 0
        %2026 = vmatpush1.bf16.msra.mxu0 %v1975
        %2027 = vmatprep.subr.bf16.mxu0 0
        %2028 = vmatpush1.bf16.msra.mxu0 %v1976
        %2029 = vmatprep.subr.bf16.mxu0 0
        %2030 = vmatpush1.bf16.msra.mxu0 %v1977
        %2031 = vmatprep.subr.bf16.mxu0 0
        %2032 = vmatpush1.bf16.msra.mxu0 %v1978
        %2033 = vmatprep.subr.bf16.mxu0 0
        %2034 = vmatpush1.bf16.msra.mxu0 %v1979
        %2035 = vmatprep.subr.bf16.mxu0 0
        %2036 = vmatpush1.bf16.msra.mxu0 %v1980
        %2037 = vmatprep.subr.bf16.mxu0 0
        %2038 = vmatpush1.bf16.msra.mxu0 %v1981
        %2039 = vmatprep.subr.bf16.mxu0 0
        %2040 = vmatpush1.bf16.msra.mxu0 %v1982
        %2041 = vmatprep.subr.bf16.mxu0 0
        %2042 = vmatpush1.bf16.msra.mxu0 %v1983
        %2043 = vmatprep.subr.bf16.mxu0 0
        %2044 = vmatpush1.bf16.msra.mxu0 %v1984
        %2045 = vmatprep.subr.bf16.mxu0 0
        %2046 = vmatpush1.bf16.msra.mxu0 %v1985
        %2047 = vmatprep.subr.bf16.mxu0 0
        %2048 = vmatpush1.bf16.msra.mxu0 %v1986
        %2049 = vmatprep.subr.bf16.mxu0 0
        %2050 = vmatpush1.bf16.msra.mxu0 %v1987
        %2051 = vmatprep.subr.bf16.mxu0 0
        %2052 = vmatpush1.bf16.msra.mxu0 %v1988
        %2053 = vmatprep.mubr.bf16.mxu0 %v1811
        %2054 = vmatmul.mubr.bf16.gmra.mrb[0].mxu0 %v1810
        %v2055 = vpop.f32.mrb[0].mxu0
        %v2056 = vadd.f32 0.0, %v2055
        %v2057 = vpop.f32.mrb[0].mxu0
        %v2058 = vpop.f32.mrb[0].mxu0
        %v2059 = vadd.f32 0.0, %v2058
        %v2060 = vpop.f32.mrb[0].mxu0
        %2061 = vmatprep.mubr.bf16.mxu0 %v1812
        %2062 = vmatmul.mubr.bf16.gmra.mrb[0].mxu0 %v1811
        %v2063 = vpop.f32.mrb[0].mxu0
        %v2064 = vadd.f32 0.0, %v2063
        %v2065 = vpop.f32.mrb[0].mxu0
        %v2066 = vpop.f32.mrb[0].mxu0
        %v2067 = vadd.f32 0.0, %v2066
        %v2068 = vpop.f32.mrb[0].mxu0
        %2069 = vmatprep.mubr.bf16.mxu0 %v1813
        %2070 = vmatmul.mubr.bf16.gmra.mrb[0].mxu0 %v1812
        %v2071 = vpop.f32.mrb[0].mxu0
        %v2072 = vadd.f32 0.0, %v2071
        %v2073 = vpop.f32.mrb[0].mxu0
        %v2074 = vpop.f32.mrb[0].mxu0
        %v2075 = vadd.f32 0.0, %v2074
        %v2076 = vpop.f32.mrb[0].mxu0
        %2077 = vmatprep.mubr.bf16.mxu0 %v1814
        %2078 = vmatmul.mubr.bf16.gmra.mrb[0].mxu0 %v1813
        %v2079 = vpop.f32.mrb[0].mxu0
        %v2080 = vadd.f32 0.0, %v2079
        %v2081 = vpop.f32.mrb[0].mxu0
        %v2082 = vpop.f32.mrb[0].mxu0
        %v2083 = vadd.f32 0.0, %v2082
        %v2084 = vpop.f32.mrb[0].mxu0
        %2085 = vmatprep.mubr.bf16.mxu0 %v1815
        %2086 = vmatmul.mubr.bf16.gmra.mrb[0].mxu0 %v1814
        %v2087 = vpop.f32.mrb[0].mxu0
        %v2088 = vadd.f32 0.0, %v2087
        %v2089 = vpop.f32.mrb[0].mxu0
        %v2090 = vpop.f32.mrb[0].mxu0
        %v2091 = vadd.f32 0.0, %v2090
        %v2092 = vpop.f32.mrb[0].mxu0
        %2093 = vmatprep.mubr.bf16.mxu0 %v1816
        %2094 = vmatmul.mubr.bf16.gmra.mrb[0].mxu0 %v1815
        %v2095 = vpop.f32.mrb[0].mxu0
        %v2096 = vadd.f32 0.0, %v2095
        %v2097 = vpop.f32.mrb[0].mxu0
        %v2098 = vpop.f32.mrb[0].mxu0
        %v2099 = vadd.f32 0.0, %v2098
        %v2100 = vpop.f32.mrb[0].mxu0
        %2101 = vmatprep.mubr.bf16.mxu0 %v1817
        %2102 = vmatmul.mubr.bf16.gmra.mrb[0].mxu0 %v1816
        %v2103 = vpop.f32.mrb[0].mxu0
        %v2104 = vadd.f32 0.0, %v2103
        %v2105 = vpop.f32.mrb[0].mxu0
        %v2106 = vpop.f32.mrb[0].mxu0
        %v2107 = vadd.f32 0.0, %v2106
        %v2108 = vpop.f32.mrb[0].mxu0
        %2109 = vmatprep.mubr.bf16.mxu0 %v1818
        %2110 = vmatmul.mubr.bf16.gmra.mrb[0].mxu0 %v1817
        %v2111 = vpop.f32.mrb[0].mxu0
        %v2112 = vadd.f32 0.0, %v2111
        %v2113 = vpop.f32.mrb[0].mxu0
        %v2114 = vpop.f32.mrb[0].mxu0
        %v2115 = vadd.f32 0.0, %v2114
        %v2116 = vpop.f32.mrb[0].mxu0
        %2117 = vmatprep.mubr.bf16.mxu0 %v1819
        %2118 = vmatmul.mubr.bf16.gmra.mrb[0].mxu0 %v1818
        %v2119 = vpop.f32.mrb[0].mxu0
        %v2120 = vadd.f32 0.0, %v2119
        %v2121 = vpop.f32.mrb[0].mxu0
        %v2122 = vpop.f32.mrb[0].mxu0
        %v2123 = vadd.f32 0.0, %v2122
        %v2124 = vpop.f32.mrb[0].mxu0
        %2125 = vmatprep.mubr.bf16.mxu0 %v1820
        %2126 = vmatmul.mubr.bf16.gmra.mrb[0].mxu0 %v1819
        %v2127 = vpop.f32.mrb[0].mxu0
        %v2128 = vadd.f32 0.0, %v2127
        %v2129 = vpop.f32.mrb[0].mxu0
        %v2130 = vpop.f32.mrb[0].mxu0
        %v2131 = vadd.f32 0.0, %v2130
        %v2132 = vpop.f32.mrb[0].mxu0
        %2133 = vmatprep.mubr.bf16.mxu0 %v1821
        %2134 = vmatmul.mubr.bf16.gmra.mrb[0].mxu0 %v1820
        %v2135 = vpop.f32.mrb[0].mxu0
        %v2136 = vadd.f32 0.0, %v2135
        %v2137 = vpop.f32.mrb[0].mxu0
        %v2138 = vpop.f32.mrb[0].mxu0
        %v2139 = vadd.f32 0.0, %v2138
        %v2140 = vpop.f32.mrb[0].mxu0
        %2141 = vmatprep.mubr.bf16.mxu0 %v1822
        %2142 = vmatmul.mubr.bf16.gmra.mrb[0].mxu0 %v1821
        %v2143 = vpop.f32.mrb[0].mxu0
        %v2144 = vadd.f32 0.0, %v2143
        %v2145 = vpop.f32.mrb[0].mxu0
        %v2146 = vpop.f32.mrb[0].mxu0
        %v2147 = vadd.f32 0.0, %v2146
        %v2148 = vpop.f32.mrb[0].mxu0
        %2149 = vmatprep.mubr.bf16.mxu0 %v1823
        %2150 = vmatmul.mubr.bf16.gmra.mrb[0].mxu0 %v1822
        %v2151 = vpop.f32.mrb[0].mxu0
        %v2152 = vadd.f32 0.0, %v2151
        %v2153 = vpop.f32.mrb[0].mxu0
        %v2154 = vpop.f32.mrb[0].mxu0
        %v2155 = vadd.f32 0.0, %v2154
        %v2156 = vpop.f32.mrb[0].mxu0
        %2157 = vmatprep.mubr.bf16.mxu0 %v1824
        %2158 = vmatmul.mubr.bf16.gmra.mrb[0].mxu0 %v1823
        %v2159 = vpop.f32.mrb[0].mxu0
        %v2160 = vadd.f32 0.0, %v2159
        %v2161 = vpop.f32.mrb[0].mxu0
        %v2162 = vpop.f32.mrb[0].mxu0
        %v2163 = vadd.f32 0.0, %v2162
        %v2164 = vpop.f32.mrb[0].mxu0
        %2165 = vmatprep.mubr.bf16.mxu0 %v1825
        %2166 = vmatmul.mubr.bf16.gmra.mrb[0].mxu0 %v1824
        %v2167 = vpop.f32.mrb[0].mxu0
        %v2168 = vadd.f32 0.0, %v2167
        %v2169 = vpop.f32.mrb[0].mxu0
        %v2170 = vpop.f32.mrb[0].mxu0
        %v2171 = vadd.f32 0.0, %v2170
        %v2172 = vpop.f32.mrb[0].mxu0
        %2173 = vmatprep.mubr.bf16.mxu0 %v1826
        %2174 = vmatmul.mubr.bf16.gmra.mrb[0].mxu0 %v1825
        %v2175 = vpop.f32.mrb[0].mxu0
        %v2176 = vadd.f32 0.0, %v2175
        %v2177 = vpop.f32.mrb[0].mxu0
        %v2178 = vpop.f32.mrb[0].mxu0
        %v2179 = vadd.f32 0.0, %v2178
        %v2180 = vpop.f32.mrb[0].mxu0
        %2181 = vdwg.mxu0
        %2182 = vmatprep.subr.bf16.mxu0 0
        %2183 = vmatpush1.bf16.msra.mxu0 %v1989
        %2184 = vmatprep.subr.bf16.mxu0 0
        %2185 = vmatpush1.bf16.msra.mxu0 %v1990
        %2186 = vmatprep.subr.bf16.mxu0 0
        %2187 = vmatpush1.bf16.msra.mxu0 %v1991
        %2188 = vmatprep.subr.bf16.mxu0 0
        %2189 = vmatpush1.bf16.msra.mxu0 %v1992
        %2190 = vmatprep.subr.bf16.mxu0 0
        %2191 = vmatpush1.bf16.msra.mxu0 %v1993
        %2192 = vmatprep.subr.bf16.mxu0 0
        %2193 = vmatpush1.bf16.msra.mxu0 %v1994
        %2194 = vmatprep.subr.bf16.mxu0 0
        %2195 = vmatpush1.bf16.msra.mxu0 %v1995
        %2196 = vmatprep.subr.bf16.mxu0 0
        %2197 = vmatpush1.bf16.msra.mxu0 %v1996
        %2198 = vmatprep.subr.bf16.mxu0 0
        %2199 = vmatpush1.bf16.msra.mxu0 0
        %2200 = vmatprep.subr.bf16.mxu0 0
        %2201 = vmatpush1.bf16.msra.mxu0 0
        %2202 = vmatprep.subr.bf16.mxu0 0
        %2203 = vmatpush1.bf16.msra.mxu0 0
        %2204 = vmatprep.subr.bf16.mxu0 0
        %2205 = vmatpush1.bf16.msra.mxu0 0
        %2206 = vmatprep.subr.bf16.mxu0 0
        %2207 = vmatpush1.bf16.msra.mxu0 0
        %2208 = vmatprep.subr.bf16.mxu0 0
        %2209 = vmatpush1.bf16.msra.mxu0 0
        %2210 = vmatprep.subr.bf16.mxu0 0
        %2211 = vmatpush1.bf16.msra.mxu0 0
        %2212 = vmatprep.subr.bf16.mxu0 0
        %2213 = vmatpush1.bf16.msra.mxu0 0
        %2214 = vmatprep.mubr.bf16.mxu0 0
        %2215 = vmatmul.mubr.bf16.gmra.mrb[0].mxu0 %v1812
        %v2216 = vpop.f32.mrb[0].mxu0
        %v2217 = vadd.f32 %v2056, %v2216
        %v2218 = vpop.f32.mrb[0].mxu0
        %v2219 = vpop.f32.mrb[0].mxu0
        %v2220 = vadd.f32 %v2059, %v2219
        %v2221 = vpop.f32.mrb[0].mxu0
        %2222 = vmatprep.mubr.bf16.mxu0 0
        %2223 = vmatmul.mubr.bf16.gmra.mrb[0].mxu0 %v1813
        %v2224 = vpop.f32.mrb[0].mxu0
        %v2225 = vadd.f32 %v2064, %v2224
        %v2226 = vpop.f32.mrb[0].mxu0
        %v2227 = vpop.f32.mrb[0].mxu0
        %v2228 = vadd.f32 %v2067, %v2227
        %v2229 = vpop.f32.mrb[0].mxu0
        %2230 = vmatprep.mubr.bf16.mxu0 0
        %2231 = vmatmul.mubr.bf16.gmra.mrb[0].mxu0 %v1814
        %v2232 = vpop.f32.mrb[0].mxu0
        %v2233 = vadd.f32 %v2072, %v2232
        %v2234 = vpop.f32.mrb[0].mxu0
        %v2235 = vpop.f32.mrb[0].mxu0
        %v2236 = vadd.f32 %v2075, %v2235
        %v2237 = vpop.f32.mrb[0].mxu0
        %2238 = vmatprep.mubr.bf16.mxu0 0
        %2239 = vmatmul.mubr.bf16.gmra.mrb[0].mxu0 %v1815
        %v2240 = vpop.f32.mrb[0].mxu0
        %v2241 = vadd.f32 %v2080, %v2240
        %v2242 = vpop.f32.mrb[0].mxu0
        %v2243 = vpop.f32.mrb[0].mxu0
        %v2244 = vadd.f32 %v2083, %v2243
        %v2245 = vpop.f32.mrb[0].mxu0
        %2246 = vmatprep.mubr.bf16.mxu0 0
        %2247 = vmatmul.mubr.bf16.gmra.mrb[0].mxu0 %v1816
        %v2248 = vpop.f32.mrb[0].mxu0
        %v2249 = vadd.f32 %v2088, %v2248
        %v2250 = vpop.f32.mrb[0].mxu0
        %v2251 = vpop.f32.mrb[0].mxu0
        %v2252 = vadd.f32 %v2091, %v2251
        %v2253 = vpop.f32.mrb[0].mxu0
        %2254 = vmatprep.mubr.bf16.mxu0 0
        %2255 = vmatmul.mubr.bf16.gmra.mrb[0].mxu0 %v1817
        %v2256 = vpop.f32.mrb[0].mxu0
        %v2257 = vadd.f32 %v2096, %v2256
        %v2258 = vpop.f32.mrb[0].mxu0
        %v2259 = vpop.f32.mrb[0].mxu0
        %v2260 = vadd.f32 %v2099, %v2259
        %v2261 = vpop.f32.mrb[0].mxu0
        %2262 = vmatprep.mubr.bf16.mxu0 0
        %2263 = vmatmul.mubr.bf16.gmra.mrb[0].mxu0 %v1818
        %v2264 = vpop.f32.mrb[0].mxu0
        %v2265 = vadd.f32 %v2104, %v2264
        %v2266 = vpop.f32.mrb[0].mxu0
        %v2267 = vpop.f32.mrb[0].mxu0
        %v2268 = vadd.f32 %v2107, %v2267
        %v2269 = vpop.f32.mrb[0].mxu0
        %2270 = vmatprep.mubr.bf16.mxu0 0
        %2271 = vmatmul.mubr.bf16.gmra.mrb[0].mxu0 %v1819
        %v2272 = vpop.f32.mrb[0].mxu0
        %v2273 = vadd.f32 %v2112, %v2272
        %v2274 = vpop.f32.mrb[0].mxu0
        %v2275 = vpop.f32.mrb[0].mxu0
        %v2276 = vadd.f32 %v2115, %v2275
        %v2277 = vpop.f32.mrb[0].mxu0
        %2278 = vmatprep.mubr.bf16.mxu0 0
        %2279 = vmatmul.mubr.bf16.gmra.mrb[0].mxu0 %v1820
        %v2280 = vpop.f32.mrb[0].mxu0
        %v2281 = vadd.f32 %v2120, %v2280
        %v2282 = vpop.f32.mrb[0].mxu0
        %v2283 = vpop.f32.mrb[0].mxu0
        %v2284 = vadd.f32 %v2123, %v2283
        %v2285 = vpop.f32.mrb[0].mxu0
        %2286 = vmatprep.mubr.bf16.mxu0 0
        %2287 = vmatmul.mubr.bf16.gmra.mrb[0].mxu0 %v1821
        %v2288 = vpop.f32.mrb[0].mxu0
        %v2289 = vadd.f32 %v2128, %v2288
        %v2290 = vpop.f32.mrb[0].mxu0
        %v2291 = vpop.f32.mrb[0].mxu0
        %v2292 = vadd.f32 %v2131, %v2291
        %v2293 = vpop.f32.mrb[0].mxu0
        %2294 = vmatprep.mubr.bf16.mxu0 0
        %2295 = vmatmul.mubr.bf16.gmra.mrb[0].mxu0 %v1822
        %v2296 = vpop.f32.mrb[0].mxu0
        %v2297 = vadd.f32 %v2136, %v2296
        %v2298 = vpop.f32.mrb[0].mxu0
        %v2299 = vpop.f32.mrb[0].mxu0
        %v2300 = vadd.f32 %v2139, %v2299
        %v2301 = vpop.f32.mrb[0].mxu0
        %2302 = vmatprep.mubr.bf16.mxu0 0
        %2303 = vmatmul.mubr.bf16.gmra.mrb[0].mxu0 %v1823
        %v2304 = vpop.f32.mrb[0].mxu0
        %v2305 = vadd.f32 %v2144, %v2304
        %v2306 = vpop.f32.mrb[0].mxu0
        %v2307 = vpop.f32.mrb[0].mxu0
        %v2308 = vadd.f32 %v2147, %v2307
        %v2309 = vpop.f32.mrb[0].mxu0
        %2310 = vmatprep.mubr.bf16.mxu0 0
        %2311 = vmatmul.mubr.bf16.gmra.mrb[0].mxu0 %v1824
        %v2312 = vpop.f32.mrb[0].mxu0
        %v2313 = vadd.f32 %v2152, %v2312
        %v2314 = vpop.f32.mrb[0].mxu0
        %v2315 = vpop.f32.mrb[0].mxu0
        %v2316 = vadd.f32 %v2155, %v2315
        %v2317 = vpop.f32.mrb[0].mxu0
        %2318 = vmatprep.mubr.bf16.mxu0 0
        %2319 = vmatmul.mubr.bf16.gmra.mrb[0].mxu0 %v1825
        %v2320 = vpop.f32.mrb[0].mxu0
        %v2321 = vadd.f32 %v2160, %v2320
        %v2322 = vpop.f32.mrb[0].mxu0
        %v2323 = vpop.f32.mrb[0].mxu0
        %v2324 = vadd.f32 %v2163, %v2323
        %v2325 = vpop.f32.mrb[0].mxu0
        %2326 = vmatprep.mubr.bf16.mxu0 0
        %2327 = vmatmul.mubr.bf16.gmra.mrb[0].mxu0 %v1826
        %v2328 = vpop.f32.mrb[0].mxu0
        %v2329 = vadd.f32 %v2168, %v2328
        %v2330 = vpop.f32.mrb[0].mxu0
        %v2331 = vpop.f32.mrb[0].mxu0
        %v2332 = vadd.f32 %v2171, %v2331
        %v2333 = vpop.f32.mrb[0].mxu0
        %2334 = vmatprep.mubr.bf16.mxu0 0
        %2335 = vmatmul.mubr.bf16.gmra.mrb[0].mxu0 %v1827
        %v2336 = vpop.f32.mrb[0].mxu0
        %v2337 = vadd.f32 %v2176, %v2336
        %v2338 = vpop.f32.mrb[0].mxu0
        %v2339 = vpop.f32.mrb[0].mxu0
        %v2340 = vadd.f32 %v2179, %v2339
        %v2341 = vpop.f32.mrb[0].mxu0
        %2342 = vdwg.mxu0
        %v2343 = vadd.f32 %v1557, %v2217
        %v2344 = vadd.f32 %v1560, %v2220
        %v2345 = vadd.f32 %v1565, %v2225
        %v2346 = vadd.f32 %v1568, %v2228
        %v2347 = vadd.f32 %v1573, %v2233
        %v2348 = vadd.f32 %v1576, %v2236
        %v2349 = vadd.f32 %v1581, %v2241
        %v2350 = vadd.f32 %v1584, %v2244
        %v2351 = vadd.f32 %v1589, %v2249
        %v2352 = vadd.f32 %v1592, %v2252
        %v2353 = vadd.f32 %v1597, %v2257
        %v2354 = vadd.f32 %v1600, %v2260
        %v2355 = vadd.f32 %v1605, %v2265
        %v2356 = vadd.f32 %v1608, %v2268
        %v2357 = vadd.f32 %v1613, %v2273
        %v2358 = vadd.f32 %v1616, %v2276
        %v2359 = vadd.f32 %v1621, %v2281
        %v2360 = vadd.f32 %v1624, %v2284
        %v2361 = vadd.f32 %v1629, %v2289
        %v2362 = vadd.f32 %v1632, %v2292
        %v2363 = vadd.f32 %v1637, %v2297
        %v2364 = vadd.f32 %v1640, %v2300
        %v2365 = vadd.f32 %v1645, %v2305
        %v2366 = vadd.f32 %v1648, %v2308
        %v2367 = vadd.f32 %v1653, %v2313
        %v2368 = vadd.f32 %v1656, %v2316
        %v2369 = vadd.f32 %v1661, %v2321
        %v2370 = vadd.f32 %v1664, %v2324
        %v2371 = vadd.f32 %v1669, %v2329
        %v2372 = vadd.f32 %v1672, %v2332
        %v2373 = vadd.f32 %v1677, %v2337
        %v2374 = vadd.f32 %v1680, %v2340
        %v2375 = vld [vmem:[%s2] sm:$0x1]
        %v2377 = vlaneseq
        %v2378 = vshrl.u32 %v2377, 7
        %v2379 = vsub.s32 0, %v2378
        %v2380 = vrot.slane %v2375, %v2379
        %v2382 = vmul.f32 %v2343, %v2380
        %v2383 = vmul.f32 %v2344, %v2380
        %v2384 = vmul.f32 %v2345, %v2380
        %v2385 = vmul.f32 %v2346, %v2380
        %v2386 = vmul.f32 %v2347, %v2380
        %v2387 = vmul.f32 %v2348, %v2380
        %v2388 = vmul.f32 %v2349, %v2380
        %v2389 = vmul.f32 %v2350, %v2380
        %v2390 = vmul.f32 %v2351, %v2380
        %v2391 = vmul.f32 %v2352, %v2380
        %v2392 = vmul.f32 %v2353, %v2380
        %v2393 = vmul.f32 %v2354, %v2380
        %v2394 = vmul.f32 %v2355, %v2380
        %v2395 = vmul.f32 %v2356, %v2380
        %v2396 = vmul.f32 %v2357, %v2380
        %v2397 = vmul.f32 %v2358, %v2380
        %v2398 = vmul.f32 %v2359, %v2380
        %v2399 = vmul.f32 %v2360, %v2380
        %v2400 = vmul.f32 %v2361, %v2380
        %v2401 = vmul.f32 %v2362, %v2380
        %v2402 = vmul.f32 %v2363, %v2380
        %v2403 = vmul.f32 %v2364, %v2380
        %v2404 = vmul.f32 %v2365, %v2380
        %v2405 = vmul.f32 %v2366, %v2380
        %v2406 = vmul.f32 %v2367, %v2380
        %v2407 = vmul.f32 %v2368, %v2380
        %v2408 = vmul.f32 %v2369, %v2380
        %v2409 = vmul.f32 %v2370, %v2380
        %v2410 = vmul.f32 %v2371, %v2380
        %v2411 = vmul.f32 %v2372, %v2380
        %v2412 = vmul.f32 %v2373, %v2380
        %v2413 = vmul.f32 %v2374, %v2380
        %v2414 = vld [vmem:[%s3] sm:$0x1]
        %v2416 = vlaneseq
        %v2417 = vshrl.u32 %v2416, 7
        %v2418 = vsub.s32 0, %v2417
        %v2419 = vrot.slane %v2414, %v2418
        %v2421 = vadd.f32 %v2382, %v2419
        %v2422 = vadd.f32 %v2383, %v2419
        %v2423 = vadd.f32 %v2384, %v2419
        %v2424 = vadd.f32 %v2385, %v2419
        %v2425 = vadd.f32 %v2386, %v2419
        %v2426 = vadd.f32 %v2387, %v2419
        %v2427 = vadd.f32 %v2388, %v2419
        %v2428 = vadd.f32 %v2389, %v2419
        %v2429 = vadd.f32 %v2390, %v2419
        %v2430 = vadd.f32 %v2391, %v2419
        %v2431 = vadd.f32 %v2392, %v2419
        %v2432 = vadd.f32 %v2393, %v2419
        %v2433 = vadd.f32 %v2394, %v2419
        %v2434 = vadd.f32 %v2395, %v2419
        %v2435 = vadd.f32 %v2396, %v2419
        %v2436 = vadd.f32 %v2397, %v2419
        %v2437 = vadd.f32 %v2398, %v2419
        %v2438 = vadd.f32 %v2399, %v2419
        %v2439 = vadd.f32 %v2400, %v2419
        %v2440 = vadd.f32 %v2401, %v2419
        %v2441 = vadd.f32 %v2402, %v2419
        %v2442 = vadd.f32 %v2403, %v2419
        %v2443 = vadd.f32 %v2404, %v2419
        %v2444 = vadd.f32 %v2405, %v2419
        %v2445 = vadd.f32 %v2406, %v2419
        %v2446 = vadd.f32 %v2407, %v2419
        %v2447 = vadd.f32 %v2408, %v2419
        %v2448 = vadd.f32 %v2409, %v2419
        %v2449 = vadd.f32 %v2410, %v2419
        %v2450 = vadd.f32 %v2411, %v2419
        %v2451 = vadd.f32 %v2412, %v2419
        %v2452 = vadd.f32 %v2413, %v2419
        %v2453 = vmax.f32 %v2421, 0.0
        %v2454 = vmax.f32 %v2422, 0.0
        %v2455 = vmax.f32 %v2423, 0.0
        %v2456 = vmax.f32 %v2424, 0.0
        %v2457 = vmax.f32 %v2425, 0.0
        %v2458 = vmax.f32 %v2426, 0.0
        %v2459 = vmax.f32 %v2427, 0.0
        %v2460 = vmax.f32 %v2428, 0.0
        %v2461 = vmax.f32 %v2429, 0.0
        %v2462 = vmax.f32 %v2430, 0.0
        %v2463 = vmax.f32 %v2431, 0.0
        %v2464 = vmax.f32 %v2432, 0.0
        %v2465 = vmax.f32 %v2433, 0.0
        %v2466 = vmax.f32 %v2434, 0.0
        %v2467 = vmax.f32 %v2435, 0.0
        %v2468 = vmax.f32 %v2436, 0.0
        %v2469 = vmax.f32 %v2437, 0.0
        %v2470 = vmax.f32 %v2438, 0.0
        %v2471 = vmax.f32 %v2439, 0.0
        %v2472 = vmax.f32 %v2440, 0.0
        %v2473 = vmax.f32 %v2441, 0.0
        %v2474 = vmax.f32 %v2442, 0.0
        %v2475 = vmax.f32 %v2443, 0.0
        %v2476 = vmax.f32 %v2444, 0.0
        %v2477 = vmax.f32 %v2445, 0.0
        %v2478 = vmax.f32 %v2446, 0.0
        %v2479 = vmax.f32 %v2447, 0.0
        %v2480 = vmax.f32 %v2448, 0.0
        %v2481 = vmax.f32 %v2449, 0.0
        %v2482 = vmax.f32 %v2450, 0.0
        %v2483 = vmax.f32 %v2451, 0.0
        %v2484 = vmax.f32 %v2452, 0.0
        %v2485 = vpack.c.bf16 %v2454, %v2453
        %v2486 = vpack.c.bf16 %v2456, %v2455
        %v2487 = vpack.c.bf16 %v2458, %v2457
        %v2488 = vpack.c.bf16 %v2460, %v2459
        %v2489 = vpack.c.bf16 %v2462, %v2461
        %v2490 = vpack.c.bf16 %v2464, %v2463
        %v2491 = vpack.c.bf16 %v2466, %v2465
        %v2492 = vpack.c.bf16 %v2468, %v2467
        %v2493 = vpack.c.bf16 %v2470, %v2469
        %v2494 = vpack.c.bf16 %v2472, %v2471
        %v2495 = vpack.c.bf16 %v2474, %v2473
        %v2496 = vpack.c.bf16 %v2476, %v2475
        %v2497 = vpack.c.bf16 %v2478, %v2477
        %v2498 = vpack.c.bf16 %v2480, %v2479
        %v2499 = vpack.c.bf16 %v2482, %v2481
        %v2500 = vpack.c.bf16 %v2484, %v2483
        %v2517 = vunpack.c.l.b16 %v2485
        %v2518 = vunpack.c.h.b16 %v2485
        %v2519 = vunpack.c.l.b16 %v2486
        %v2520 = vunpack.c.h.b16 %v2486
        %v2521 = vunpack.c.l.b16 %v2487
        %v2522 = vunpack.c.h.b16 %v2487
        %v2523 = vunpack.c.l.b16 %v2488
        %v2524 = vunpack.c.h.b16 %v2488
        %v2525 = vunpack.c.l.b16 %v2489
        %v2526 = vunpack.c.h.b16 %v2489
        %v2527 = vunpack.c.l.b16 %v2490
        %v2528 = vunpack.c.h.b16 %v2490
        %v2529 = vunpack.c.l.b16 %v2491
        %v2530 = vunpack.c.h.b16 %v2491
        %v2531 = vunpack.c.l.b16 %v2492
        %v2532 = vunpack.c.h.b16 %v2492
        %v2533 = vunpack.c.l.b16 %v2493
        %v2534 = vunpack.c.h.b16 %v2493
        %v2535 = vunpack.c.l.b16 %v2494
        %v2536 = vunpack.c.h.b16 %v2494
        %v2537 = vunpack.c.l.b16 %v2495
        %v2538 = vunpack.c.h.b16 %v2495
        %v2539 = vunpack.c.l.b16 %v2496
        %v2540 = vunpack.c.h.b16 %v2496
        %v2541 = vunpack.c.l.b16 %v2497
        %v2542 = vunpack.c.h.b16 %v2497
        %v2543 = vunpack.c.l.b16 %v2498
        %v2544 = vunpack.c.h.b16 %v2498
        %v2545 = vunpack.c.l.b16 %v2499
        %v2546 = vunpack.c.h.b16 %v2499
        %v2547 = vunpack.c.l.b16 %v2500
        %v2548 = vunpack.c.h.b16 %v2500
        %v2549 = vpack.c.b16 %v2517, %v2517
        %v2550 = vpack.c.b16 %v2518, %v2518
        %v2551 = vpack.c.b16 %v2519, %v2519
        %v2552 = vpack.c.b16 %v2520, %v2520
        %v2553 = vpack.c.b16 %v2521, %v2521
        %v2554 = vpack.c.b16 %v2522, %v2522
        %v2555 = vpack.c.b16 %v2523, %v2523
        %v2556 = vpack.c.b16 %v2524, %v2524
        %v2557 = vpack.c.b16 %v2525, %v2525
        %v2558 = vpack.c.b16 %v2526, %v2526
        %v2559 = vpack.c.b16 %v2527, %v2527
        %v2560 = vpack.c.b16 %v2528, %v2528
        %v2561 = vpack.c.b16 %v2529, %v2529
        %v2562 = vpack.c.b16 %v2530, %v2530
        %v2563 = vpack.c.b16 %v2531, %v2531
        %v2564 = vpack.c.b16 %v2532, %v2532
        %v2565 = vpack.c.b16 %v2533, %v2533
        %v2566 = vpack.c.b16 %v2534, %v2534
        %v2567 = vpack.c.b16 %v2535, %v2535
        %v2568 = vpack.c.b16 %v2536, %v2536
        %v2569 = vpack.c.b16 %v2537, %v2537
        %v2570 = vpack.c.b16 %v2538, %v2538
        %v2571 = vpack.c.b16 %v2539, %v2539
        %v2572 = vpack.c.b16 %v2540, %v2540
        %v2573 = vpack.c.b16 %v2541, %v2541
        %v2574 = vpack.c.b16 %v2542, %v2542
        %v2575 = vpack.c.b16 %v2543, %v2543
        %v2576 = vpack.c.b16 %v2544, %v2544
        %v2577 = vpack.c.b16 %v2545, %v2545
        %v2578 = vpack.c.b16 %v2546, %v2546
        %v2579 = vpack.c.b16 %v2547, %v2547
        %v2580 = vpack.c.b16 %v2548, %v2548
        %2613 = vst [vmem:[%s230] sm:$0xf] %v2549
        %2614 = vst [vmem:[%s230 + $0x4] sm:$0xf] %v2550
        %2615 = vst [vmem:[%s230 + $0x8] sm:$0xf] %v2551
        %2616 = vst [vmem:[%s230 + $0xc] sm:$0xf] %v2552
        %2617 = vst [vmem:[%s230 + $0x10] sm:$0xf] %v2553
        %2618 = vst [vmem:[%s230 + $0x14] sm:$0xf] %v2554
        %2619 = vst [vmem:[%s230 + $0x18] sm:$0xf] %v2555
        %2620 = vst [vmem:[%s230 + $0x1c] sm:$0xf] %v2556
        %2621 = vst [vmem:[%s230 + $0x20] sm:$0xf] %v2557
        %2622 = vst [vmem:[%s230 + $0x24] sm:$0xf] %v2558
        %2623 = vst [vmem:[%s230 + $0x28] sm:$0xf] %v2559
        %2624 = vst [vmem:[%s230 + $0x2c] sm:$0xf] %v2560
        %2625 = vst [vmem:[%s230 + $0x30] sm:$0xf] %v2561
        %2626 = vst [vmem:[%s230 + $0x34] sm:$0xf] %v2562
        %2627 = vst [vmem:[%s230 + $0x38] sm:$0xf] %v2563
        %2628 = vst [vmem:[%s230 + $0x3c] sm:$0xf] %v2564
        %2629 = vst [vmem:[%s230 + $0x40] sm:$0xf] %v2565
        %2630 = vst [vmem:[%s230 + $0x44] sm:$0xf] %v2566
        %2631 = vst [vmem:[%s230 + $0x48] sm:$0xf] %v2567
        %2632 = vst [vmem:[%s230 + $0x4c] sm:$0xf] %v2568
        %2633 = vst [vmem:[%s230 + $0x50] sm:$0xf] %v2569
        %2634 = vst [vmem:[%s230 + $0x54] sm:$0xf] %v2570
        %2635 = vst [vmem:[%s230 + $0x58] sm:$0xf] %v2571
        %2636 = vst [vmem:[%s230 + $0x5c] sm:$0xf] %v2572
        %2637 = vst [vmem:[%s230 + $0x60] sm:$0xf] %v2573
        %2638 = vst [vmem:[%s230 + $0x64] sm:$0xf] %v2574
        %2639 = vst [vmem:[%s230 + $0x68] sm:$0xf] %v2575
        %2640 = vst [vmem:[%s230 + $0x6c] sm:$0xf] %v2576
        %2641 = vst [vmem:[%s230 + $0x70] sm:$0xf] %v2577
        %2642 = vst [vmem:[%s230 + $0x74] sm:$0xf] %v2578
        %2643 = vst [vmem:[%s230 + $0x78] sm:$0xf] %v2579
        %2644 = vst [vmem:[%s230 + $0x7c] sm:$0xf] %v2580
        %s2645 = sand.u32 %s119, 1
        %s2646 = scalar_lea.sflag [#allocation5], %s2645
        %s2647 = sand.u32 %s119, 1
        %s2648 = smul.addr %s2647, 128
        %s2649 = scalar_lea.vmem [#allocation8], %s2648
        // Predicated region
        $region45: #{tpu_custom_call.1} parent=35 // pred_check
          %p2650 = pneg %p129
        $region46: #{tpu_custom_call.1} parent=35 // pred_check_branch
          %2652 = sbr.rel (%p2650) target = $region48
        $region47: #{tpu_custom_call.1} parent=35 // pred_region
          %s2654 = ssub.s32 2048, 2048
          %2655 = vsyncadd %s2646, %s2654
          %s2656 = smul.addr %s22, 32
          %s2657 = smul.addr %s2656, 64
          %s2658 = scalar_lea.hbm %s4, %s2657
          %s2659 = sshll.u32 %s2649, 4
          %s2660 = int_to_ptr.vmem [resolvable:$true] %s2659
          %2665 = dma.vmem_to_hbm [thread:$0]  %s2660, 2048, %s2658, %s2646, 64, 64, 4
        $region48: #{tpu_custom_call.1} parent=35 // pred_fallthru
          _
      $region36: #{tpu_custom_call.1} parent=5 // pred_fallthru
        _
      %p2666 = scmp.le.s32.totalorder 2, %s17
      // Predicated region
      $region49: #{tpu_custom_call.1} parent=5 // pred_check
        %p2667 = pneg %p2666
      $region50: #{tpu_custom_call.1} parent=5 // pred_check_branch
        %2669 = sbr.rel (%p2667) target = $region52
      $region51: #{tpu_custom_call.1} parent=5 // pred_region
        %s2670 = ssub.s32 %s17, 2
        // Predicated region
        $region53: #{tpu_custom_call.1} parent=51 // pred_check
          %p2671 = pneg %p135
        $region54: #{tpu_custom_call.1} parent=51 // pred_check_branch
          %2673 = sbr.rel (%p2671) target = $region56
        $region55: #{tpu_custom_call.1} parent=51 // pred_region
          %s2674 = sand.u32 %s120, 1
          %s2675 = scalar_lea.sflag [#allocation5], %s2674
          %s2676 = sand.u32 %s120, 1
          %s2677 = smul.addr %s2676, 128
          %s2678 = scalar_lea.vmem [#allocation8], %s2677
          %2679 = dma.done %s2675, 2048
        $region56: #{tpu_custom_call.1} parent=51 // pred_fallthru
          _
      $region52: #{tpu_custom_call.1} parent=5 // pred_fallthru
        _
    $region6: #{tpu_custom_call.1} parent=1 // loop_footer
      %s21 = sadd.s32 1, %s17
    $region7: #{tpu_custom_call.1} parent=1 // loop_footer_branch
      %16 = sbr.rel target = $region3
    $region8: #{tpu_custom_call.1} parent=1 // loop_exit
      _
    %2680 = vsyncpa [#allocation4], 1
    %s2681 = scalar_lea.sflag [#allocation4], 1
    %2682 = vsyncpa %s2681, 1
    %2683 = vsyncpa [#allocation7], 1
    %2684 = vsyncpa [#allocation5], 1
    %s2685 = scalar_lea.sflag [#allocation5], 1
    %2686 = vsyncpa %s2685, 1

</llo_original>
